<compile_context>
chip_gen: v7x
topology: tpu7x:2x2x1
jax: 0.10.0
libtpu: 0.0.40
codegen_flags: <defaults>
</compile_context>

<pallas_src>
import jax
import jax.numpy as jnp
from jax import lax
from jax.experimental import pallas as pl
from jax.experimental.pallas import tpu as pltpu

LANE = 128


def _round_up(x, m):
    return ((x + m - 1) // m) * m


def _phys_vmem_bytes():
    """Per-core physical VMEM (generation-aware), conservative fallback."""
    try:
        return int(pltpu.get_tpu_info().vmem_capacity_bytes)
    except Exception:
        return 64 << 20  # v7x per-TensorCore size (smallest current gen)


# ------------------------------ Pallas kernel -------------------------------

def _jigsaw_fused_kernel(x_ref, w1_ref, b1_ref, w2_ref, w3_ref, b3_ref, o_ref):
    """Fused fc1 -> (shuffled) fc2 -> l2norm for one tile of images.

    x_ref : (k, TIMG, Din_p)    bf16   slot-major, rows already permuted
    w1_ref: (Din_p, Din_p)      bf16   b1_ref: (1, Din_p)  f32
    w2_ref: (Din_p, Dout_p)     bf16
    w3_ref: (k, Dout_p, Dout_p) bf16   (fc2 weight split into per-slot blocks)
    b3_ref: (1, Dout_p)         f32    (already includes the folded b2 term)
    o_ref : (TIMG, Dout_p)      f32
    """
    k = x_ref.shape[0]
    b1 = b1_ref[...]  # hoisted: loaded/broadcast once per grid step

    def body(j, acc):
        # fc1 layer 1 (MXU, bf16 in, f32 acc) + bias + ReLU in f32
        h = jnp.dot(x_ref[j], w1_ref[...], preferred_element_type=jnp.float32)
        h = jnp.maximum(h + b1, 0.0)
        # fc1 layer 2 (b2 folded into b3 on the host)
        y = jnp.dot(h.astype(jnp.bfloat16), w2_ref[...],
                    preferred_element_type=jnp.float32)
        # slot-j contribution of fc2: y_slot_j @ W3_block_j
        return acc + jnp.dot(y.astype(jnp.bfloat16), w3_ref[j],
                             preferred_element_type=jnp.float32)

    acc = lax.fori_loop(0, k, body, jnp.zeros(o_ref.shape, jnp.float32),
                        unroll=True)
    acc = acc + b3_ref[...]
    # F.normalize(p=2, dim=1): x / max(||x||, 1e-12) == x * rsqrt(max(||x||^2, 1e-24))
    sq = jnp.sum(acc * acc, axis=1, keepdims=True)
    inv = lax.rsqrt(jnp.maximum(sq, 1e-24))
    o_ref[...] = (acc * inv).astype(o_ref.dtype)


# -------------------------------- JigsawHead --------------------------------

class JigsawHeadPallas:
    def __init__(self, dim_in, dim_out, k=4, key=None, timg_target=512):
        self.dim_in = dim_in
        self.dim_out = dim_out
        self.k = k
        self.timg_target = timg_target
        self.din_p = _round_up(dim_in, LANE)
        self.dout_p = _round_up(dim_out, LANE)

        if key is None:
            key = jax.random.PRNGKey(42)
        k1, k2, k3, k4, k5, k6 = jax.random.split(key, 6)

        # nn.Linear-style init. Weights stored transposed ([in, out]) so the
        # kernel computes x @ W_t + b == PyTorch's x @ W^T + b. Weights are
        # rounded through bf16 once so kernel and reference share exact values.
        def uw(kk, shape, scale):
            w = jax.random.uniform(kk, shape, jnp.float32, -scale, scale)
            return w.astype(jnp.bfloat16).astype(jnp.float32)

        s1 = 1.0 / (dim_in ** 0.5)
        s2 = 1.0 / (dim_in ** 0.5)
        s3 = 1.0 / ((dim_out * k) ** 0.5)

        self.w1_t = uw(k1, (dim_in, dim_in), s1)
        self.b1 = jax.random.uniform(k2, (1, dim_in), jnp.float32, -s1, s1)
        self.w2_t = uw(k3, (dim_in, dim_out), s2)
        self.b2 = jax.random.uniform(k4, (1, dim_out), jnp.float32, -s2, s2)
        self.w3_t = uw(k5, (dim_out * k, dim_out), s3)
        self.b3 = jax.random.uniform(k6, (1, dim_out), jnp.float32, -s3, s3)

        # Fold b2 into b3:  b3' = b3 + sum_j b2 @ W3_block_j = b3 + tile(b2,k) @ W3_t
        # (exact regardless of the shuffle, and computed once in f32).
        b3_fold = self.b3 + jnp.tile(self.b2, (1, k)) @ self.w3_t

        # Padded (lane-dense) bf16 weight / f32 bias copies for the kernel.
        # Zero padding keeps the math (including the L2 norm) exact.
        din_p, dout_p = self.din_p, self.dout_p
        self.w1_p = (jnp.zeros((din_p, din_p), jnp.bfloat16)
                     .at[:dim_in, :dim_in].set(self.w1_t.astype(jnp.bfloat16)))
        self.b1_p = (jnp.zeros((1, din_p), jnp.float32)
                     .at[:, :dim_in].set(self.b1))
        self.w2_p = (jnp.zeros((din_p, dout_p), jnp.bfloat16)
                     .at[:dim_in, :dim_out].set(self.w2_t.astype(jnp.bfloat16)))
        w3_blocks = self.w3_t.reshape(k, dim_out, dim_out)  # block j = W3_t[jD:(j+1)D, :]
        self.w3_p = (jnp.zeros((k, dout_p, dout_p), jnp.bfloat16)
                     .at[:, :dim_out, :dim_out].set(w3_blocks.astype(jnp.bfloat16)))
        self.b3_p = (jnp.zeros((1, dout_p), jnp.float32)
                     .at[:, :dim_out].set(b3_fold))

    # Mirror of the PyTorch get_shuffle_ids (vectorized; deterministic via key).
    def get_shuffle_ids(self, bsz, key):
        n_img = bsz // self.k
        keys = jax.random.split(key, n_img)
        rnd_ids = jax.vmap(lambda kk: jax.random.permutation(kk, self.k))(keys)
        base_ids = jnp.arange(n_img, dtype=rnd_ids.dtype)[:, None] * self.k
        return (rnd_ids + base_ids).reshape(-1)

    def _image_tile(self, n_img):
        # Sublane-aligned tile, capped so the grid has >= 2 steps whenever
        # possible (keeps both v7x TensorCores busy).
        half = _round_up(pl.cdiv(n_img, 2), 8)
        timg = max(8, min((self.timg_target // 8) * 8, half))
        return timg, _round_up(n_img, timg)

    def __call__(self, x, shuffle_key):
        bsz = x.shape[0]
        assert bsz % self.k == 0
        n_img = bsz // self.k
        k, din_p, dout_p = self.k, self.din_p, self.dout_p

        # Cast to bf16 *first* so the gather / transpose / pad copies move half
        # the bytes. Row shuffle on the input commutes with the row-wise fc1;
        # slot-major layout so each kernel slot j sees contiguous image rows.
        xb = x.astype(jnp.bfloat16)
        ids = self.get_shuffle_ids(bsz, shuffle_key)
        xs = xb[ids]
        xr = xs.reshape(n_img, k, self.dim_in).transpose(1, 0, 2)  # (k, n_img, Din)

        timg, n_pad = self._image_tile(n_img)

        # VMEM budget: weights single-buffered, x/out tiles double-buffered,
        # plus kernel-internal f32 temporaries (h, y, acc, normalized out).
        weight_bytes = ((self.w1_p.size + self.w2_p.size + self.w3_p.size) * 2
                        + (self.b1_p.size + self.b3_p.size) * 4)

        def vmem_needed(t):
            x_tile = 2 * (k * t * din_p * 2)
            o_tile = 2 * (t * dout_p * 4)
            temps = t * din_p * 4 + 3 * t * dout_p * 4
            return weight_bytes + x_tile + o_tile + temps + (2 << 20)

        cap = max(_phys_vmem_bytes() - (4 << 20), 8 << 20)   # generation-aware
        while vmem_needed(timg) > cap and timg > 8:
            timg = max(8, ((timg // 2) // 8) * 8)
        n_pad = _round_up(n_img, timg)
        # Always set an explicit limit (v5e's default scoped limit is only 16 MiB).
        vmem_limit = int(min(max(vmem_needed(timg), 32 << 20), cap))

        xr = jnp.pad(xr, ((0, 0), (0, n_pad - n_img), (0, din_p - self.dim_in)))

        grid = (n_pad // timg,)

        flops = 2 * n_pad * k * (din_p * din_p + din_p * dout_p + dout_p * dout_p)
        bytes_accessed = (xr.size * 2
                          + (self.w1_p.size + self.w2_p.size + self.w3_p.size) * 2
                          + (self.b1_p.size + self.b3_p.size) * 4
                          + n_pad * dout_p * 4)

        resident = pl.Buffered(1)  # constant index_map -> no need to double-buffer

        out = pl.pallas_call(
            _jigsaw_fused_kernel,
            out_shape=jax.ShapeDtypeStruct((n_pad, dout_p), jnp.float32),
            grid_spec=pltpu.PrefetchScalarGridSpec(
                num_scalar_prefetch=0,
                grid=grid,
                in_specs=[
                    pl.BlockSpec((k, timg, din_p), lambda t: (0, t, 0)),   # x (pipelined)
                    pl.BlockSpec((din_p, din_p), lambda t: (0, 0),
                                 pipeline_mode=resident),                  # w1
                    pl.BlockSpec((1, din_p), lambda t: (0, 0),
                                 pipeline_mode=resident),                  # b1
                    pl.BlockSpec((din_p, dout_p), lambda t: (0, 0),
                                 pipeline_mode=resident),                  # w2
                    pl.BlockSpec((k, dout_p, dout_p), lambda t: (0, 0, 0),
                                 pipeline_mode=resident),                  # w3
                    pl.BlockSpec((1, dout_p), lambda t: (0, 0),
                                 pipeline_mode=resident),                  # b3 (folded)
                ],
                out_specs=pl.BlockSpec((timg, dout_p), lambda t: (t, 0)),
            ),
            compiler_params=pltpu.CompilerParams(
                dimension_semantics=("parallel",),
                vmem_limit_bytes=vmem_limit,
            ),
            cost_estimate=pl.CostEstimate(
                flops=flops, transcendentals=n_pad, bytes_accessed=bytes_accessed),
        )(xr, self.w1_p, self.b1_p, self.w2_p, self.w3_p, self.b3_p)

        return out[:n_img, :self.dim_out]


# --------------------------------- reference ---------------------------------

def _reference_forward(head, x, shuffle_key):
    # Pure f32 JAX mirror of the PyTorch module (same weights as the kernel).
    y = jnp.maximum(x @ head.w1_t + head.b1, 0.0)
    y = y @ head.w2_t + head.b2
    ids = head.get_shuffle_ids(x.shape[0], shuffle_key)
    y = y[ids]
    z = y.reshape(x.shape[0] // head.k, -1)
    z = z @ head.w3_t + head.b3
    n = jnp.sqrt(jnp.sum(z * z, axis=1, keepdims=True))
    return z / jnp.maximum(n, 1e-12)


if __name__ == "__main__":
    dim_in, dim_out, k = 32, 16, 4
    bsz = 64  # n_img = 16 -> 2 grid steps with timg_target=8 below

    key = jax.random.PRNGKey(0)
    kx, kshuf, kparams = jax.random.split(key, 3)
    x = jax.random.normal(kx, (bsz, dim_in), dtype=jnp.float32)

    # Small image-tile target so the toy run exercises a multi-step grid
    # (production default is 512 -> 2048 batch rows per grid step).
    head = JigsawHeadPallas(dim_in, dim_out, k=k, key=kparams, timg_target=8)

    out = jax.block_until_ready(head(x, kshuf))
    ref = _reference_forward(head, x, kshuf)

    assert out.shape == (bsz // k, dim_out)
    # bf16 activations with f32 accumulation -> loose-ish tolerance vs f32 ref.
    assert jnp.allclose(out, ref, atol=3e-2, rtol=3e-2), \
        float(jnp.max(jnp.abs(out - ref)))

    print("KERNEL_OK")
</pallas_src>

<mosaic_0001>
module attributes {stable_mosaic.version = 11 : i64} {
  func.func @_jigsaw_fused_kernel(%arg0: i32, %arg1: memref<4x8x128xbf16, #tpu.memory_space<vmem>>, %arg2: memref<128x128xbf16, #tpu.memory_space<vmem>>, %arg3: memref<1x128xf32, #tpu.memory_space<vmem>>, %arg4: memref<128x128xbf16, #tpu.memory_space<vmem>>, %arg5: memref<4x128x128xbf16, #tpu.memory_space<vmem>>, %arg6: memref<1x128xf32, #tpu.memory_space<vmem>>, %arg7: memref<8x128xf32, #tpu.memory_space<vmem>>) attributes {dimension_semantics = [#tpu.dimension_semantics<parallel>], iteration_bounds = array<i64: 2>, scalar_prefetch = 0 : i64, scratch_operands = 0 : i64, tpu.core_type = #tpu.core_type<tc>, window_params = [{transform_indices = @transform_0, window_bounds = array<i64: 4, 8, 128>}, {pipeline_mode = #tpu.pipeline_mode<synchronous>, transform_indices = @transform_1, window_bounds = array<i64: 128, 128>}, {pipeline_mode = #tpu.pipeline_mode<synchronous>, transform_indices = @transform_2, window_bounds = array<i64: 1, 128>}, {pipeline_mode = #tpu.pipeline_mode<synchronous>, transform_indices = @transform_3, window_bounds = array<i64: 128, 128>}, {pipeline_mode = #tpu.pipeline_mode<synchronous>, transform_indices = @transform_4, window_bounds = array<i64: 4, 128, 128>}, {pipeline_mode = #tpu.pipeline_mode<synchronous>, transform_indices = @transform_5, window_bounds = array<i64: 1, 128>}, {transform_indices = @transform_6, window_bounds = array<i64: 8, 128>}]} {
    %c0 = arith.constant 0 : index
    %c0_0 = arith.constant 0 : index
    %0 = vector.load %arg3[%c0, %c0_0] : memref<1x128xf32, #tpu.memory_space<vmem>>, vector<1x128xf32>
    %cst = arith.constant 0.000000e+00 : f32
    %1 = vector.broadcast %cst : f32 to vector<8x128xf32>
    %c0_i32 = arith.constant 0 : i32
    %2 = arith.index_cast %c0_i32 : i32 to index
    %c0_1 = arith.constant 0 : index
    %c0_2 = arith.constant 0 : index
    %3 = vector.load %arg1[%2, %c0_1, %c0_2] : memref<4x8x128xbf16, #tpu.memory_space<vmem>>, vector<1x8x128xbf16>
    %4 = vector.shape_cast %3 : vector<1x8x128xbf16> to vector<8x128xbf16>
    %c0_3 = arith.constant 0 : index
    %c0_4 = arith.constant 0 : index
    %5 = vector.load %arg2[%c0_3, %c0_4] : memref<128x128xbf16, #tpu.memory_space<vmem>>, vector<128x128xbf16>
    %cst_5 = arith.constant dense<0.000000e+00> : vector<8x128xf32>
    %6 = tpu.matmul %4, %5, %cst_5 {dimension_numbers = #tpu.dot_dimension_numbers<[1], [0], [0], [1], [0, 0, 1, 1], [], []>} : vector<8x128xbf16>, vector<128x128xbf16>, vector<8x128xf32> -> vector<8x128xf32>
    %7 = vector.broadcast %0 : vector<1x128xf32> to vector<8x128xf32>
    %8 = arith.addf %6, %7 : vector<8x128xf32>
    %cst_6 = arith.constant 0.000000e+00 : f32
    %9 = vector.broadcast %cst_6 : f32 to vector<8x128xf32>
    %10 = arith.maximumf %8, %9 : vector<8x128xf32>
    %11 = arith.truncf %10 : vector<8x128xf32> to vector<8x128xbf16>
    %c0_7 = arith.constant 0 : index
    %c0_8 = arith.constant 0 : index
    %12 = vector.load %arg4[%c0_7, %c0_8] : memref<128x128xbf16, #tpu.memory_space<vmem>>, vector<128x128xbf16>
    %cst_9 = arith.constant dense<0.000000e+00> : vector<8x128xf32>
    %13 = tpu.matmul %11, %12, %cst_9 {dimension_numbers = #tpu.dot_dimension_numbers<[1], [0], [0], [1], [0, 0, 1, 1], [], []>} : vector<8x128xbf16>, vector<128x128xbf16>, vector<8x128xf32> -> vector<8x128xf32>
    %14 = arith.truncf %13 : vector<8x128xf32> to vector<8x128xbf16>
    %15 = arith.index_cast %c0_i32 : i32 to index
    %c0_10 = arith.constant 0 : index
    %c0_11 = arith.constant 0 : index
    %16 = vector.load %arg5[%15, %c0_10, %c0_11] : memref<4x128x128xbf16, #tpu.memory_space<vmem>>, vector<1x128x128xbf16>
    %17 = vector.shape_cast %16 : vector<1x128x128xbf16> to vector<128x128xbf16>
    %cst_12 = arith.constant dense<0.000000e+00> : vector<8x128xf32>
    %18 = tpu.matmul %14, %17, %cst_12 {dimension_numbers = #tpu.dot_dimension_numbers<[1], [0], [0], [1], [0, 0, 1, 1], [], []>} : vector<8x128xbf16>, vector<128x128xbf16>, vector<8x128xf32> -> vector<8x128xf32>
    %19 = arith.addf %1, %18 : vector<8x128xf32>
    %c1_i32 = arith.constant 1 : i32
    %20 = arith.index_cast %c1_i32 : i32 to index
    %c0_13 = arith.constant 0 : index
    %c0_14 = arith.constant 0 : index
    %21 = vector.load %arg1[%20, %c0_13, %c0_14] : memref<4x8x128xbf16, #tpu.memory_space<vmem>>, vector<1x8x128xbf16>
    %22 = vector.shape_cast %21 : vector<1x8x128xbf16> to vector<8x128xbf16>
    %c0_15 = arith.constant 0 : index
    %c0_16 = arith.constant 0 : index
    %23 = vector.load %arg2[%c0_15, %c0_16] : memref<128x128xbf16, #tpu.memory_space<vmem>>, vector<128x128xbf16>
    %cst_17 = arith.constant dense<0.000000e+00> : vector<8x128xf32>
    %24 = tpu.matmul %22, %23, %cst_17 {dimension_numbers = #tpu.dot_dimension_numbers<[1], [0], [0], [1], [0, 0, 1, 1], [], []>} : vector<8x128xbf16>, vector<128x128xbf16>, vector<8x128xf32> -> vector<8x128xf32>
    %25 = vector.broadcast %0 : vector<1x128xf32> to vector<8x128xf32>
    %26 = arith.addf %24, %25 : vector<8x128xf32>
    %cst_18 = arith.constant 0.000000e+00 : f32
    %27 = vector.broadcast %cst_18 : f32 to vector<8x128xf32>
    %28 = arith.maximumf %26, %27 : vector<8x128xf32>
    %29 = arith.truncf %28 : vector<8x128xf32> to vector<8x128xbf16>
    %c0_19 = arith.constant 0 : index
    %c0_20 = arith.constant 0 : index
    %30 = vector.load %arg4[%c0_19, %c0_20] : memref<128x128xbf16, #tpu.memory_space<vmem>>, vector<128x128xbf16>
    %cst_21 = arith.constant dense<0.000000e+00> : vector<8x128xf32>
    %31 = tpu.matmul %29, %30, %cst_21 {dimension_numbers = #tpu.dot_dimension_numbers<[1], [0], [0], [1], [0, 0, 1, 1], [], []>} : vector<8x128xbf16>, vector<128x128xbf16>, vector<8x128xf32> -> vector<8x128xf32>
    %32 = arith.truncf %31 : vector<8x128xf32> to vector<8x128xbf16>
    %33 = arith.index_cast %c1_i32 : i32 to index
    %c0_22 = arith.constant 0 : index
    %c0_23 = arith.constant 0 : index
    %34 = vector.load %arg5[%33, %c0_22, %c0_23] : memref<4x128x128xbf16, #tpu.memory_space<vmem>>, vector<1x128x128xbf16>
    %35 = vector.shape_cast %34 : vector<1x128x128xbf16> to vector<128x128xbf16>
    %cst_24 = arith.constant dense<0.000000e+00> : vector<8x128xf32>
    %36 = tpu.matmul %32, %35, %cst_24 {dimension_numbers = #tpu.dot_dimension_numbers<[1], [0], [0], [1], [0, 0, 1, 1], [], []>} : vector<8x128xbf16>, vector<128x128xbf16>, vector<8x128xf32> -> vector<8x128xf32>
    %37 = arith.addf %19, %36 : vector<8x128xf32>
    %c2_i32 = arith.constant 2 : i32
    %38 = arith.index_cast %c2_i32 : i32 to index
    %c0_25 = arith.constant 0 : index
    %c0_26 = arith.constant 0 : index
    %39 = vector.load %arg1[%38, %c0_25, %c0_26] : memref<4x8x128xbf16, #tpu.memory_space<vmem>>, vector<1x8x128xbf16>
    %40 = vector.shape_cast %39 : vector<1x8x128xbf16> to vector<8x128xbf16>
    %c0_27 = arith.constant 0 : index
    %c0_28 = arith.constant 0 : index
    %41 = vector.load %arg2[%c0_27, %c0_28] : memref<128x128xbf16, #tpu.memory_space<vmem>>, vector<128x128xbf16>
    %cst_29 = arith.constant dense<0.000000e+00> : vector<8x128xf32>
    %42 = tpu.matmul %40, %41, %cst_29 {dimension_numbers = #tpu.dot_dimension_numbers<[1], [0], [0], [1], [0, 0, 1, 1], [], []>} : vector<8x128xbf16>, vector<128x128xbf16>, vector<8x128xf32> -> vector<8x128xf32>
    %43 = vector.broadcast %0 : vector<1x128xf32> to vector<8x128xf32>
    %44 = arith.addf %42, %43 : vector<8x128xf32>
    %cst_30 = arith.constant 0.000000e+00 : f32
    %45 = vector.broadcast %cst_30 : f32 to vector<8x128xf32>
    %46 = arith.maximumf %44, %45 : vector<8x128xf32>
    %47 = arith.truncf %46 : vector<8x128xf32> to vector<8x128xbf16>
    %c0_31 = arith.constant 0 : index
    %c0_32 = arith.constant 0 : index
    %48 = vector.load %arg4[%c0_31, %c0_32] : memref<128x128xbf16, #tpu.memory_space<vmem>>, vector<128x128xbf16>
    %cst_33 = arith.constant dense<0.000000e+00> : vector<8x128xf32>
    %49 = tpu.matmul %47, %48, %cst_33 {dimension_numbers = #tpu.dot_dimension_numbers<[1], [0], [0], [1], [0, 0, 1, 1], [], []>} : vector<8x128xbf16>, vector<128x128xbf16>, vector<8x128xf32> -> vector<8x128xf32>
    %50 = arith.truncf %49 : vector<8x128xf32> to vector<8x128xbf16>
    %51 = arith.index_cast %c2_i32 : i32 to index
    %c0_34 = arith.constant 0 : index
    %c0_35 = arith.constant 0 : index
    %52 = vector.load %arg5[%51, %c0_34, %c0_35] : memref<4x128x128xbf16, #tpu.memory_space<vmem>>, vector<1x128x128xbf16>
    %53 = vector.shape_cast %52 : vector<1x128x128xbf16> to vector<128x128xbf16>
    %cst_36 = arith.constant dense<0.000000e+00> : vector<8x128xf32>
    %54 = tpu.matmul %50, %53, %cst_36 {dimension_numbers = #tpu.dot_dimension_numbers<[1], [0], [0], [1], [0, 0, 1, 1], [], []>} : vector<8x128xbf16>, vector<128x128xbf16>, vector<8x128xf32> -> vector<8x128xf32>
    %55 = arith.addf %37, %54 : vector<8x128xf32>
    %c3_i32 = arith.constant 3 : i32
    %56 = arith.index_cast %c3_i32 : i32 to index
    %c0_37 = arith.constant 0 : index
    %c0_38 = arith.constant 0 : index
    %57 = vector.load %arg1[%56, %c0_37, %c0_38] : memref<4x8x128xbf16, #tpu.memory_space<vmem>>, vector<1x8x128xbf16>
    %58 = vector.shape_cast %57 : vector<1x8x128xbf16> to vector<8x128xbf16>
    %c0_39 = arith.constant 0 : index
    %c0_40 = arith.constant 0 : index
    %59 = vector.load %arg2[%c0_39, %c0_40] : memref<128x128xbf16, #tpu.memory_space<vmem>>, vector<128x128xbf16>
    %cst_41 = arith.constant dense<0.000000e+00> : vector<8x128xf32>
    %60 = tpu.matmul %58, %59, %cst_41 {dimension_numbers = #tpu.dot_dimension_numbers<[1], [0], [0], [1], [0, 0, 1, 1], [], []>} : vector<8x128xbf16>, vector<128x128xbf16>, vector<8x128xf32> -> vector<8x128xf32>
    %61 = vector.broadcast %0 : vector<1x128xf32> to vector<8x128xf32>
    %62 = arith.addf %60, %61 : vector<8x128xf32>
    %cst_42 = arith.constant 0.000000e+00 : f32
    %63 = vector.broadcast %cst_42 : f32 to vector<8x128xf32>
    %64 = arith.maximumf %62, %63 : vector<8x128xf32>
    %65 = arith.truncf %64 : vector<8x128xf32> to vector<8x128xbf16>
    %c0_43 = arith.constant 0 : index
    %c0_44 = arith.constant 0 : index
    %66 = vector.load %arg4[%c0_43, %c0_44] : memref<128x128xbf16, #tpu.memory_space<vmem>>, vector<128x128xbf16>
    %cst_45 = arith.constant dense<0.000000e+00> : vector<8x128xf32>
    %67 = tpu.matmul %65, %66, %cst_45 {dimension_numbers = #tpu.dot_dimension_numbers<[1], [0], [0], [1], [0, 0, 1, 1], [], []>} : vector<8x128xbf16>, vector<128x128xbf16>, vector<8x128xf32> -> vector<8x128xf32>
    %68 = arith.truncf %67 : vector<8x128xf32> to vector<8x128xbf16>
    %69 = arith.index_cast %c3_i32 : i32 to index
    %c0_46 = arith.constant 0 : index
    %c0_47 = arith.constant 0 : index
    %70 = vector.load %arg5[%69, %c0_46, %c0_47] : memref<4x128x128xbf16, #tpu.memory_space<vmem>>, vector<1x128x128xbf16>
    %71 = vector.shape_cast %70 : vector<1x128x128xbf16> to vector<128x128xbf16>
    %cst_48 = arith.constant dense<0.000000e+00> : vector<8x128xf32>
    %72 = tpu.matmul %68, %71, %cst_48 {dimension_numbers = #tpu.dot_dimension_numbers<[1], [0], [0], [1], [0, 0, 1, 1], [], []>} : vector<8x128xbf16>, vector<128x128xbf16>, vector<8x128xf32> -> vector<8x128xf32>
    %73 = arith.addf %55, %72 : vector<8x128xf32>
    %c4_i32 = arith.constant 4 : i32
    %c0_49 = arith.constant 0 : index
    %c0_50 = arith.constant 0 : index
    %74 = vector.load %arg6[%c0_49, %c0_50] : memref<1x128xf32, #tpu.memory_space<vmem>>, vector<1x128xf32>
    %75 = vector.broadcast %74 : vector<1x128xf32> to vector<8x128xf32>
    %76 = arith.addf %73, %75 : vector<8x128xf32>
    %77 = arith.mulf %76, %76 : vector<8x128xf32>
    %cst_51 = arith.constant dense<0.000000e+00> : vector<8xf32>
    %78 = vector.multi_reduction <add>, %77, %cst_51 [1] : vector<8x128xf32> to vector<8xf32>
    %79 = vector.shape_cast %78 : vector<8xf32> to vector<8x1xf32>
    %cst_52 = arith.constant 1.000000e-24 : f32
    %80 = vector.broadcast %cst_52 : f32 to vector<8x1xf32>
    %81 = arith.maximumf %79, %80 : vector<8x1xf32>
    %82 = math.rsqrt %81 : vector<8x1xf32>
    %83 = vector.broadcast %82 : vector<8x1xf32> to vector<8x128xf32>
    %84 = arith.mulf %76, %83 : vector<8x128xf32>
    %c0_53 = arith.constant 0 : index
    %c0_54 = arith.constant 0 : index
    %85 = vector.load %arg7[%c0_53, %c0_54] : memref<8x128xf32, #tpu.memory_space<vmem>>, vector<8x128xf32>
    tpu.vector_store %arg7[%c0_53, %c0_54], %84 {strides = array<i32>} : memref<8x128xf32, #tpu.memory_space<vmem>>, vector<8x128xf32>,
    return
  }
  func.func @transform_0(%arg0: i32) -> (i32, i32, i32) {
    %c0_i32 = arith.constant 0 : i32
    %c0_i32_0 = arith.constant 0 : i32
    %c0_i32_1 = arith.constant 0 : i32
    return %c0_i32, %arg0, %c0_i32_0 : i32, i32, i32
  }
  func.func @transform_1(%arg0: i32) -> (i32, i32) {
    %c0_i32 = arith.constant 0 : i32
    %c0_i32_0 = arith.constant 0 : i32
    %c0_i32_1 = arith.constant 0 : i32
    return %c0_i32, %c0_i32_0 : i32, i32
  }
  func.func @transform_2(%arg0: i32) -> (i32, i32) {
    %c0_i32 = arith.constant 0 : i32
    %c0_i32_0 = arith.constant 0 : i32
    %c0_i32_1 = arith.constant 0 : i32
    return %c0_i32, %c0_i32_0 : i32, i32
  }
  func.func @transform_3(%arg0: i32) -> (i32, i32) {
    %c0_i32 = arith.constant 0 : i32
    %c0_i32_0 = arith.constant 0 : i32
    %c0_i32_1 = arith.constant 0 : i32
    return %c0_i32, %c0_i32_0 : i32, i32
  }
  func.func @transform_4(%arg0: i32) -> (i32, i32, i32) {
    %c0_i32 = arith.constant 0 : i32
    %c0_i32_0 = arith.constant 0 : i32
    %c0_i32_1 = arith.constant 0 : i32
    %c0_i32_2 = arith.constant 0 : i32
    return %c0_i32, %c0_i32_0, %c0_i32_1 : i32, i32, i32
  }
  func.func @transform_5(%arg0: i32) -> (i32, i32) {
    %c0_i32 = arith.constant 0 : i32
    %c0_i32_0 = arith.constant 0 : i32
    %c0_i32_1 = arith.constant 0 : i32
    return %c0_i32, %c0_i32_0 : i32, i32
  }
  func.func @transform_6(%arg0: i32) -> (i32, i32) {
    %c0_i32 = arith.constant 0 : i32
    %c0_i32_0 = arith.constant 0 : i32
    return %arg0, %c0_i32 : i32, i32
  }
}

</mosaic_0001>

<llo_original>
// kernel: tpu_custom_call.1
$region0: #{tpu_custom_call.1}
  #allocation0 [shape = 'u32[]', space=smem, size = 0x4, offset = 0x4, fixed_abs, tag = 'smem constant byte address 0x4 - core index']
  #allocation1 [shape = 'u32[144,128]{1,0:T(1,128)}', space=vmem, size = 0x12000, scoped, tag = 'internal scratch']
  %s0 = inlined_call_operand.hbm [shape: bf16[4,16,128], index: 0, kind: input, shape index: {}]
  %s1 = inlined_call_operand.hbm [shape: bf16[128,128], index: 1, kind: input, shape index: {}]
  %s2 = inlined_call_operand.vmem [shape: f32[1,128], index: 2, kind: input, shape index: {}]
  %s3 = inlined_call_operand.hbm [shape: bf16[128,128], index: 3, kind: input, shape index: {}]
  %s4 = inlined_call_operand.hbm [shape: bf16[4,128,128], index: 4, kind: input, shape index: {}]
  %s5 = inlined_call_operand.vmem [shape: f32[1,128], index: 5, kind: input, shape index: {}]
  %s6 = inlined_call_operand.hbm [shape: f32[16,128], index: 6, kind: output, shape index: {}]
  %s7 = sld [smem:[#allocation0]]
  $region73: #{tpu_custom_call.1} parent=0
    _
  %s9 = ssub.s32 1, %s7
  %s10 = scalar_select 0, %s9, %s7
  $region1: #{tpu_custom_call.1} parent=0
    #allocation2 [shape = 'u8[16384]{0}', space=vmem, size = 0x4000, scoped, tag = 'input window, operand 0']
    #allocation3 [shape = 's32[2]{0}', space=sflag, size = 0x8, scoped, tag = 'scoped memory for tpu_custom_call.1']
    #allocation4 [shape = 's32[2]{0}', space=sflag, size = 0x8, scoped, tag = 'scoped memory for tpu_custom_call.1']
    #allocation5 [shape = 'u8[32768]{0}', space=vmem, size = 0x8000, scoped, tag = 'input window, operand 1, single buffered']
    #allocation6 [shape = 's32[1]{0}', space=sflag, size = 0x4, scoped, tag = 'scoped memory for tpu_custom_call.1']
    #allocation7 [shape = 'u8[32768]{0}', space=vmem, size = 0x8000, scoped, tag = 'input window, operand 3, single buffered']
    #allocation8 [shape = 'u8[131072]{0}', space=vmem, size = 0x20000, scoped, tag = 'input window, operand 4, single buffered']
    #allocation9 [shape = 's32[1]{0}', space=sflag, size = 0x4, scoped, tag = 'scoped memory for tpu_custom_call.1']
    #allocation10 [shape = 'u8[8192]{0}', space=vmem, size = 0x2000, scoped, tag = 'output window, operand 0']
    %11 = vsyncpa [#allocation3], 0
    %s12 = scalar_lea.sflag [#allocation3], 1
    %13 = vsyncpa %s12, 0
    %14 = vsyncpa [#allocation6], 0
    %15 = vsyncpa [#allocation9], 0
    %16 = vsyncpa [#allocation4], 0
    %s17 = scalar_lea.sflag [#allocation4], 1
    %18 = vsyncpa %s17, 0
    loop: start=0, step=1, limit=4
    $region2: #{tpu_custom_call.1} parent=1 // loop_pre_header
      _
    $region3: #{tpu_custom_call.1} parent=1 // loop_header
      %s20 = sphi 0, %s24
      %p21 = scmp.ge.s32.totalorder %s20, 4
      %s30 = sphi 0, %s32
      %s33 = sphi 0, %s30
      %s34 = sphi 0, %s33
      %s50 = sphi 0, %s34
      %s54 = sphi 0, %s54
      %s56 = sphi 0, %s54
      %s57 = sphi 0, %s56
      %s71 = sphi 0, %s57
      %s75 = sphi 0, %s75
      %s77 = sphi 0, %s75
      %s78 = sphi 0, %s77
      %s92 = sphi 0, %s78
      %s96 = sphi 0, %s96
      %s98 = sphi 0, %s96
      %s99 = sphi 0, %s98
      %s113 = sphi 0, %s99
      %s117 = sphi 0, %s117
      %s119 = sphi 0, %s117
      %s120 = sphi 0, %s119
      %s134 = sphi 0, %s120
      %s138 = sphi 0, %s138
      %s140 = sphi 0, %s138
      %s141 = sphi 0, %s140
      %s155 = sphi 0, %s141
      %s161 = sphi 0, %s163
      %s164 = sphi 0, %s161
      %s165 = sphi 0, %s164
      %s181 = sphi 0, %s165
    $region4: #{tpu_custom_call.1} parent=1 // loop_header_branch
      %23 = sbr.rel (%p21) target = $region8
    $region5: #{tpu_custom_call.1} parent=1 // loop_body
      %s25 = ssub.s32 %s20, 1
      %s26 = ssub.s32 %s20, 2
      %s27 = sadd.s32 %s20, 1
      %s28 = ssub.s32 %s20, %s27
      %p29 = scmp.eq.s32.totalorder %s28, 0
      %s31 = sadd.s32 %s30, 1
      %s32 = scalar_select %p29, %s30, %s31
      %p35 = pneg %p29
      %p36 = scmp.eq.s32.totalorder %s20, 1
      %p37 = por %p35, %p36
      %p38 = scmp.ne.s32.totalorder %s30, %s33
      %p39 = scmp.eq.s32.totalorder %s20, 0
      %p40 = por %p38, %p39
      %p41 = scmp.ne.s32.totalorder %s30, %s33
      %p42 = scmp.eq.s32.totalorder %s25, 1
      %p43 = por %p41, %p42
      %p44 = scmp.ne.s32.totalorder %s33, %s34
      %p45 = scmp.eq.s32.totalorder %s25, 0
      %p46 = por %p44, %p45
      %p47 = scmp.ne.s32.totalorder %s33, %s34
      %p48 = scmp.eq.s32.totalorder %s26, 1
      %p49 = por %p47, %p48
      %p51 = scmp.ne.s32.totalorder %s34, %s50
      %p52 = scmp.eq.s32.totalorder %s26, 0
      %p53 = por %p51, %p52
      %s55 = sadd.s32 %s54, 1
      %p58 = scmp.eq.s32.totalorder %s20, 1
      %p59 = scmp.ne.s32.totalorder %s54, %s56
      %p60 = scmp.eq.s32.totalorder %s20, 0
      %p61 = por %p59, %p60
      %p62 = scmp.ne.s32.totalorder %s54, %s56
      %p63 = scmp.eq.s32.totalorder %s25, 1
      %p64 = por %p62, %p63
      %p65 = scmp.ne.s32.totalorder %s56, %s57
      %p66 = scmp.eq.s32.totalorder %s25, 0
      %p67 = por %p65, %p66
      %p68 = scmp.ne.s32.totalorder %s56, %s57
      %p69 = scmp.eq.s32.totalorder %s26, 1
      %p70 = por %p68, %p69
      %p72 = scmp.ne.s32.totalorder %s57, %s71
      %p73 = scmp.eq.s32.totalorder %s26, 0
      %p74 = por %p72, %p73
      %s76 = sadd.s32 %s75, 1
      %p79 = scmp.eq.s32.totalorder %s20, 1
      %p80 = scmp.ne.s32.totalorder %s75, %s77
      %p81 = scmp.eq.s32.totalorder %s20, 0
      %p82 = por %p80, %p81
      %p83 = scmp.ne.s32.totalorder %s75, %s77
      %p84 = scmp.eq.s32.totalorder %s25, 1
      %p85 = por %p83, %p84
      %p86 = scmp.ne.s32.totalorder %s77, %s78
      %p87 = scmp.eq.s32.totalorder %s25, 0
      %p88 = por %p86, %p87
      %p89 = scmp.ne.s32.totalorder %s77, %s78
      %p90 = scmp.eq.s32.totalorder %s26, 1
      %p91 = por %p89, %p90
      %p93 = scmp.ne.s32.totalorder %s78, %s92
      %p94 = scmp.eq.s32.totalorder %s26, 0
      %p95 = por %p93, %p94
      %s97 = sadd.s32 %s96, 1
      %p100 = scmp.eq.s32.totalorder %s20, 1
      %p101 = scmp.ne.s32.totalorder %s96, %s98
      %p102 = scmp.eq.s32.totalorder %s20, 0
      %p103 = por %p101, %p102
      %p104 = scmp.ne.s32.totalorder %s96, %s98
      %p105 = scmp.eq.s32.totalorder %s25, 1
      %p106 = por %p104, %p105
      %p107 = scmp.ne.s32.totalorder %s98, %s99
      %p108 = scmp.eq.s32.totalorder %s25, 0
      %p109 = por %p107, %p108
      %p110 = scmp.ne.s32.totalorder %s98, %s99
      %p111 = scmp.eq.s32.totalorder %s26, 1
      %p112 = por %p110, %p111
      %p114 = scmp.ne.s32.totalorder %s99, %s113
      %p115 = scmp.eq.s32.totalorder %s26, 0
      %p116 = por %p114, %p115
      %s118 = sadd.s32 %s117, 1
      %p121 = scmp.eq.s32.totalorder %s20, 1
      %p122 = scmp.ne.s32.totalorder %s117, %s119
      %p123 = scmp.eq.s32.totalorder %s20, 0
      %p124 = por %p122, %p123
      %p125 = scmp.ne.s32.totalorder %s117, %s119
      %p126 = scmp.eq.s32.totalorder %s25, 1
      %p127 = por %p125, %p126
      %p128 = scmp.ne.s32.totalorder %s119, %s120
      %p129 = scmp.eq.s32.totalorder %s25, 0
      %p130 = por %p128, %p129
      %p131 = scmp.ne.s32.totalorder %s119, %s120
      %p132 = scmp.eq.s32.totalorder %s26, 1
      %p133 = por %p131, %p132
      %p135 = scmp.ne.s32.totalorder %s120, %s134
      %p136 = scmp.eq.s32.totalorder %s26, 0
      %p137 = por %p135, %p136
      %s139 = sadd.s32 %s138, 1
      %p142 = scmp.eq.s32.totalorder %s20, 1
      %p143 = scmp.ne.s32.totalorder %s138, %s140
      %p144 = scmp.eq.s32.totalorder %s20, 0
      %p145 = por %p143, %p144
      %p146 = scmp.ne.s32.totalorder %s138, %s140
      %p147 = scmp.eq.s32.totalorder %s25, 1
      %p148 = por %p146, %p147
      %p149 = scmp.ne.s32.totalorder %s140, %s141
      %p150 = scmp.eq.s32.totalorder %s25, 0
      %p151 = por %p149, %p150
      %p152 = scmp.ne.s32.totalorder %s140, %s141
      %p153 = scmp.eq.s32.totalorder %s26, 1
      %p154 = por %p152, %p153
      %p156 = scmp.ne.s32.totalorder %s141, %s155
      %p157 = scmp.eq.s32.totalorder %s26, 0
      %p158 = por %p156, %p157
      %s159 = ssub.s32 %s20, %s27
      %p160 = scmp.eq.s32.totalorder %s159, 0
      %s162 = sadd.s32 %s161, 1
      %s163 = scalar_select %p160, %s161, %s162
      %p166 = pneg %p160
      %p167 = scmp.eq.s32.totalorder %s20, 1
      %p168 = por %p166, %p167
      %p169 = scmp.ne.s32.totalorder %s161, %s164
      %p170 = scmp.eq.s32.totalorder %s20, 0
      %p171 = por %p169, %p170
      %p172 = scmp.ne.s32.totalorder %s161, %s164
      %p173 = scmp.eq.s32.totalorder %s25, 1
      %p174 = por %p172, %p173
      %p175 = scmp.ne.s32.totalorder %s164, %s165
      %p176 = scmp.eq.s32.totalorder %s25, 0
      %p177 = por %p175, %p176
      %p178 = scmp.ne.s32.totalorder %s164, %s165
      %p179 = scmp.eq.s32.totalorder %s26, 1
      %p180 = por %p178, %p179
      %p182 = scmp.ne.s32.totalorder %s165, %s181
      %p183 = scmp.eq.s32.totalorder %s26, 0
      %p184 = por %p182, %p183
      %p185 = scmp.le.s32.totalorder 1, %s20
      %p186 = scmp.lt.s32.totalorder %s20, 3
      %p187 = pnand %p185, %p186
      %p188 = pneg %p187
      // Predicated region
      $region9: #{tpu_custom_call.1} parent=5 // pred_check
        _
      $region10: #{tpu_custom_call.1} parent=5 // pred_check_branch
        %190 = sbr.rel (%p187) target = $region12
      $region11: #{tpu_custom_call.1} parent=5 // pred_region
        %s191 = ssub.s32 %s20, 1
        // Predicated region
        $region13: #{tpu_custom_call.1} parent=11 // pred_check
          %p192 = pneg %p67
        $region14: #{tpu_custom_call.1} parent=11 // pred_check_branch
          %194 = sbr.rel (%p192) target = $region16
        $region15: #{tpu_custom_call.1} parent=11 // pred_region
          %s196 = ssub.s32 1024, 1024
          %197 = vsyncadd [#allocation6], %s196
          %s198 = sshll.u32 [#allocation5], 4
          %s199 = int_to_ptr.vmem [resolvable:$true] %s198
          %204 = dma.hbm_to_vmem [thread:$0]  %s1, 1024, %s199, [#allocation6], 64, 64, 4
        $region16: #{tpu_custom_call.1} parent=11 // pred_fallthru
          _
        // Predicated region
        $region17: #{tpu_custom_call.1} parent=11 // pred_check
          %p205 = pneg %p88
        $region18: #{tpu_custom_call.1} parent=11 // pred_check_branch
          %207 = sbr.rel (%p205) target = $region20
        $region19: #{tpu_custom_call.1} parent=11 // pred_region
          _
        $region20: #{tpu_custom_call.1} parent=11 // pred_fallthru
          _
        // Predicated region
        $region21: #{tpu_custom_call.1} parent=11 // pred_check
          %p208 = pneg %p109
        $region22: #{tpu_custom_call.1} parent=11 // pred_check_branch
          %210 = sbr.rel (%p208) target = $region24
        $region23: #{tpu_custom_call.1} parent=11 // pred_region
          %s212 = ssub.s32 1024, 1024
          %213 = vsyncadd [#allocation6], %s212
          %s214 = sshll.u32 [#allocation7], 4
          %s215 = int_to_ptr.vmem [resolvable:$true] %s214
          %220 = dma.hbm_to_vmem [thread:$0]  %s3, 1024, %s215, [#allocation6], 64, 64, 4
        $region24: #{tpu_custom_call.1} parent=11 // pred_fallthru
          _
        // Predicated region
        $region25: #{tpu_custom_call.1} parent=11 // pred_check
          %p221 = pneg %p130
        $region26: #{tpu_custom_call.1} parent=11 // pred_check_branch
          %223 = sbr.rel (%p221) target = $region28
        $region27: #{tpu_custom_call.1} parent=11 // pred_region
          %s225 = ssub.s32 4096, 4096
          %226 = vsyncadd [#allocation9], %s225
          %s227 = sshll.u32 [#allocation8], 4
          %s228 = int_to_ptr.vmem [resolvable:$true] %s227
          %233 = dma.hbm_to_vmem [thread:$0]  %s4, 4096, %s228, [#allocation9], 64, 64, 4
        $region28: #{tpu_custom_call.1} parent=11 // pred_fallthru
          _
        // Predicated region
        $region29: #{tpu_custom_call.1} parent=11 // pred_check
          %p234 = pneg %p151
        $region30: #{tpu_custom_call.1} parent=11 // pred_check_branch
          %236 = sbr.rel (%p234) target = $region32
        $region31: #{tpu_custom_call.1} parent=11 // pred_region
          _
        $region32: #{tpu_custom_call.1} parent=11 // pred_fallthru
          _
      $region12: #{tpu_custom_call.1} parent=5 // pred_fallthru
        _
      %p237 = scmp.lt.s32.totalorder %s20, 2
      // Predicated region
      $region33: #{tpu_custom_call.1} parent=5 // pred_check
        %p238 = pneg %p237
      $region34: #{tpu_custom_call.1} parent=5 // pred_check_branch
        %240 = sbr.rel (%p238) target = $region36
      $region35: #{tpu_custom_call.1} parent=5 // pred_region
        // Predicated region
        $region37: #{tpu_custom_call.1} parent=35 // pred_check
          %p241 = pneg %p40
        $region38: #{tpu_custom_call.1} parent=35 // pred_check_branch
          %243 = sbr.rel (%p241) target = $region40
        $region39: #{tpu_custom_call.1} parent=35 // pred_region
          %s244 = sand.u32 %s30, 1
          %s245 = scalar_lea.sflag [#allocation3], %s244
          %s246 = sand.u32 %s30, 1
          %s247 = smul.addr %s246, 16
          %s248 = scalar_lea.vmem [#allocation2], %s247
          %s250 = ssub.s32 256, 256
          %251 = vsyncadd %s245, %s250
          %s252 = smul.addr %s20, 64
          %s253 = scalar_lea.hbm %s0, %s252
          %s254 = sshll.u32 %s248, 4
          %s255 = int_to_ptr.vmem [resolvable:$true] %s254
          %260 = dma.hbm_to_vmem [thread:$0]  %s253, 256, %s255, %s245, 128, 64, 4
        $region40: #{tpu_custom_call.1} parent=35 // pred_fallthru
          _
      $region36: #{tpu_custom_call.1} parent=5 // pred_fallthru
        _
      %p261 = scmp.le.s32.totalorder 1, %s20
      %p262 = scmp.lt.s32.totalorder %s20, 3
      %p263 = pnand %p261, %p262
      %p264 = pneg %p263
      // Predicated region
      $region41: #{tpu_custom_call.1} parent=5 // pred_check
        _
      $region42: #{tpu_custom_call.1} parent=5 // pred_check_branch
        %266 = sbr.rel (%p263) target = $region44
      $region43: #{tpu_custom_call.1} parent=5 // pred_region
        %s267 = ssub.s32 %s20, 1
        %s268 = sand.u32 %s33, 1
        %s269 = scalar_lea.sflag [#allocation3], %s268
        %s270 = sand.u32 %s33, 1
        %s271 = smul.addr %s270, 16
        %s272 = scalar_lea.vmem [#allocation2], %s271
        // Predicated region
        $region45: #{tpu_custom_call.1} parent=43 // pred_check
          %p273 = pneg %p46
        $region46: #{tpu_custom_call.1} parent=43 // pred_check_branch
          %275 = sbr.rel (%p273) target = $region48
        $region47: #{tpu_custom_call.1} parent=43 // pred_region
          %276 = dma.done %s269, 256
        $region48: #{tpu_custom_call.1} parent=43 // pred_fallthru
          _
        // Predicated region
        $region49: #{tpu_custom_call.1} parent=43 // pred_check
          %p277 = pneg %p67
        $region50: #{tpu_custom_call.1} parent=43 // pred_check_branch
          %279 = sbr.rel (%p277) target = $region52
        $region51: #{tpu_custom_call.1} parent=43 // pred_region
          %280 = dma.done [#allocation6], 1024
        $region52: #{tpu_custom_call.1} parent=43 // pred_fallthru
          _
        // Predicated region
        $region53: #{tpu_custom_call.1} parent=43 // pred_check
          %p281 = pneg %p109
        $region54: #{tpu_custom_call.1} parent=43 // pred_check_branch
          %283 = sbr.rel (%p281) target = $region56
        $region55: #{tpu_custom_call.1} parent=43 // pred_region
          %284 = dma.done [#allocation6], 1024
        $region56: #{tpu_custom_call.1} parent=43 // pred_fallthru
          _
        // Predicated region
        $region57: #{tpu_custom_call.1} parent=43 // pred_check
          %p285 = pneg %p130
        $region58: #{tpu_custom_call.1} parent=43 // pred_check_branch
          %287 = sbr.rel (%p285) target = $region60
        $region59: #{tpu_custom_call.1} parent=43 // pred_region
          %288 = dma.done [#allocation9], 4096
        $region60: #{tpu_custom_call.1} parent=43 // pred_fallthru
          _
        %s289 = sand.u32 %s33, 1
        %s290 = scalar_lea.sflag [#allocation3], %s289
        %s291 = sand.u32 %s33, 1
        %s292 = smul.addr %s291, 16
        %s293 = scalar_lea.vmem [#allocation2], %s292
        %p294 = pneg %p46
        %p295 = pneg %p43
        %p296 = pneg %p67
        %p297 = pneg %p64
        %p298 = pneg %p88
        %p299 = pneg %p85
        %p300 = pneg %p109
        %p301 = pneg %p106
        %p302 = pneg %p130
        %p303 = pneg %p127
        %p304 = pneg %p151
        %p305 = pneg %p148
        %p306 = pneg %p177
        %p307 = pneg %p174
        %s308 = sand.u32 %s164, 1
        %s309 = scalar_lea.sflag [#allocation4], %s308
        %s310 = sand.u32 %s164, 1
        %s311 = smul.addr %s310, 8
        %s312 = scalar_lea.vmem [#allocation10], %s311
        %v314 = vld [vmem:[%s2] sm:$0x1]
        %v315 = vld [vmem:[%s272] sm:$0xf]
        %v316 = vld [vmem:[#allocation5] sm:$0xf]
        %v317 = vld [vmem:[#allocation5 + $0x4] sm:$0xf]
        %v318 = vld [vmem:[#allocation5 + $0x8] sm:$0xf]
        %v319 = vld [vmem:[#allocation5 + $0xc] sm:$0xf]
        %v320 = vld [vmem:[#allocation5 + $0x10] sm:$0xf]
        %v321 = vld [vmem:[#allocation5 + $0x14] sm:$0xf]
        %v322 = vld [vmem:[#allocation5 + $0x18] sm:$0xf]
        %v323 = vld [vmem:[#allocation5 + $0x1c] sm:$0xf]
        %v324 = vld [vmem:[#allocation5 + $0x20] sm:$0xf]
        %v325 = vld [vmem:[#allocation5 + $0x24] sm:$0xf]
        %v326 = vld [vmem:[#allocation5 + $0x28] sm:$0xf]
        %v327 = vld [vmem:[#allocation5 + $0x2c] sm:$0xf]
        %v328 = vld [vmem:[#allocation5 + $0x30] sm:$0xf]
        %v329 = vld [vmem:[#allocation5 + $0x34] sm:$0xf]
        %v330 = vld [vmem:[#allocation5 + $0x38] sm:$0xf]
        %v331 = vld [vmem:[#allocation5 + $0x3c] sm:$0xf]
        %v333 = vlaneseq
        %v334 = vshrl.u32 %v333, 7
        %v335 = vsub.s32 0, %v334
        %v336 = vrot.slane %v314, %v335
        %v354 = vunpack.c.l.b16 %v316
        %v355 = vunpack.c.l.b16 %v317
        %v356 = vunpack.c.l.b16 %v318
        %v357 = vunpack.c.l.b16 %v319
        %v358 = vunpack.c.l.b16 %v320
        %v359 = vunpack.c.l.b16 %v321
        %v360 = vunpack.c.l.b16 %v322
        %v361 = vunpack.c.l.b16 %v323
        %v362 = vunpack.c.l.b16 %v324
        %v363 = vunpack.c.l.b16 %v325
        %v364 = vunpack.c.l.b16 %v326
        %v365 = vunpack.c.l.b16 %v327
        %v366 = vunpack.c.l.b16 %v328
        %v367 = vunpack.c.l.b16 %v329
        %v368 = vunpack.c.l.b16 %v330
        %v369 = vunpack.c.l.b16 %v331
        %v370 = vpack.c.b16 %v355, %v354
        %v371 = vpack.c.b16 %v357, %v356
        %v372 = vpack.c.b16 %v359, %v358
        %v373 = vpack.c.b16 %v361, %v360
        %v374 = vpack.c.b16 %v363, %v362
        %v375 = vpack.c.b16 %v365, %v364
        %v376 = vpack.c.b16 %v367, %v366
        %v377 = vpack.c.b16 %v369, %v368
        %386 = vmatprep.subr.bf16.mxu0 0
        %387 = vmatpush1.bf16.msra.mxu0 %v370
        %388 = vmatprep.subr.bf16.mxu0 0
        %389 = vmatpush1.bf16.msra.mxu0 %v371
        %390 = vmatprep.subr.bf16.mxu0 0
        %391 = vmatpush1.bf16.msra.mxu0 %v372
        %392 = vmatprep.subr.bf16.mxu0 0
        %393 = vmatpush1.bf16.msra.mxu0 %v373
        %394 = vmatprep.subr.bf16.mxu0 0
        %395 = vmatpush1.bf16.msra.mxu0 %v374
        %396 = vmatprep.subr.bf16.mxu0 0
        %397 = vmatpush1.bf16.msra.mxu0 %v375
        %398 = vmatprep.subr.bf16.mxu0 0
        %399 = vmatpush1.bf16.msra.mxu0 %v376
        %400 = vmatprep.subr.bf16.mxu0 0
        %401 = vmatpush1.bf16.msra.mxu0 %v377
        %402 = vmatprep.subr.bf16.mxu0 0
        %403 = vmatpush1.bf16.msra.mxu0 0
        %404 = vmatprep.subr.bf16.mxu0 0
        %405 = vmatpush1.bf16.msra.mxu0 0
        %406 = vmatprep.subr.bf16.mxu0 0
        %407 = vmatpush1.bf16.msra.mxu0 0
        %408 = vmatprep.subr.bf16.mxu0 0
        %409 = vmatpush1.bf16.msra.mxu0 0
        %410 = vmatprep.subr.bf16.mxu0 0
        %411 = vmatpush1.bf16.msra.mxu0 0
        %412 = vmatprep.subr.bf16.mxu0 0
        %413 = vmatpush1.bf16.msra.mxu0 0
        %414 = vmatprep.subr.bf16.mxu0 0
        %415 = vmatpush1.bf16.msra.mxu0 0
        %416 = vmatprep.subr.bf16.mxu0 0
        %417 = vmatpush1.bf16.msra.mxu0 0
        %418 = vmatprep.mubr.bf16.mxu0 0
        %419 = vmatmul.mubr.bf16.gmra.mrb[0].mxu0 %v315
        %v420 = vpop.f32.mrb[0].mxu0
        %v421 = vadd.f32 %v336, %v420
        %v422 = vpop.f32.mrb[0].mxu0
        %v423 = vpop.f32.mrb[0].mxu0
        %v424 = vpop.f32.mrb[0].mxu0
        %425 = vdwg.mxu0
        %v426 = vmax.f32 %v421, 0.0
        %v427 = vpack.c.bf16 %v426, %v426
        %v428 = vld [vmem:[#allocation7] sm:$0xf]
        %v429 = vld [vmem:[#allocation7 + $0x4] sm:$0xf]
        %v430 = vld [vmem:[#allocation7 + $0x8] sm:$0xf]
        %v431 = vld [vmem:[#allocation7 + $0xc] sm:$0xf]
        %v432 = vld [vmem:[#allocation7 + $0x10] sm:$0xf]
        %v433 = vld [vmem:[#allocation7 + $0x14] sm:$0xf]
        %v434 = vld [vmem:[#allocation7 + $0x18] sm:$0xf]
        %v435 = vld [vmem:[#allocation7 + $0x1c] sm:$0xf]
        %v436 = vld [vmem:[#allocation7 + $0x20] sm:$0xf]
        %v437 = vld [vmem:[#allocation7 + $0x24] sm:$0xf]
        %v438 = vld [vmem:[#allocation7 + $0x28] sm:$0xf]
        %v439 = vld [vmem:[#allocation7 + $0x2c] sm:$0xf]
        %v440 = vld [vmem:[#allocation7 + $0x30] sm:$0xf]
        %v441 = vld [vmem:[#allocation7 + $0x34] sm:$0xf]
        %v442 = vld [vmem:[#allocation7 + $0x38] sm:$0xf]
        %v443 = vld [vmem:[#allocation7 + $0x3c] sm:$0xf]
        %v460 = vunpack.c.l.b16 %v428
        %v461 = vunpack.c.l.b16 %v429
        %v462 = vunpack.c.l.b16 %v430
        %v463 = vunpack.c.l.b16 %v431
        %v464 = vunpack.c.l.b16 %v432
        %v465 = vunpack.c.l.b16 %v433
        %v466 = vunpack.c.l.b16 %v434
        %v467 = vunpack.c.l.b16 %v435
        %v468 = vunpack.c.l.b16 %v436
        %v469 = vunpack.c.l.b16 %v437
        %v470 = vunpack.c.l.b16 %v438
        %v471 = vunpack.c.l.b16 %v439
        %v472 = vunpack.c.l.b16 %v440
        %v473 = vunpack.c.l.b16 %v441
        %v474 = vunpack.c.l.b16 %v442
        %v475 = vunpack.c.l.b16 %v443
        %v476 = vpack.c.b16 %v461, %v460
        %v477 = vpack.c.b16 %v463, %v462
        %v478 = vpack.c.b16 %v465, %v464
        %v479 = vpack.c.b16 %v467, %v466
        %v480 = vpack.c.b16 %v469, %v468
        %v481 = vpack.c.b16 %v471, %v470
        %v482 = vpack.c.b16 %v473, %v472
        %v483 = vpack.c.b16 %v475, %v474
        %492 = vmatprep.subr.bf16.mxu0 0
        %493 = vmatpush1.bf16.msra.mxu0 %v476
        %494 = vmatprep.subr.bf16.mxu0 0
        %495 = vmatpush1.bf16.msra.mxu0 %v477
        %496 = vmatprep.subr.bf16.mxu0 0
        %497 = vmatpush1.bf16.msra.mxu0 %v478
        %498 = vmatprep.subr.bf16.mxu0 0
        %499 = vmatpush1.bf16.msra.mxu0 %v479
        %500 = vmatprep.subr.bf16.mxu0 0
        %501 = vmatpush1.bf16.msra.mxu0 %v480
        %502 = vmatprep.subr.bf16.mxu0 0
        %503 = vmatpush1.bf16.msra.mxu0 %v481
        %504 = vmatprep.subr.bf16.mxu0 0
        %505 = vmatpush1.bf16.msra.mxu0 %v482
        %506 = vmatprep.subr.bf16.mxu0 0
        %507 = vmatpush1.bf16.msra.mxu0 %v483
        %508 = vmatprep.subr.bf16.mxu0 0
        %509 = vmatpush1.bf16.msra.mxu0 0
        %510 = vmatprep.subr.bf16.mxu0 0
        %511 = vmatpush1.bf16.msra.mxu0 0
        %512 = vmatprep.subr.bf16.mxu0 0
        %513 = vmatpush1.bf16.msra.mxu0 0
        %514 = vmatprep.subr.bf16.mxu0 0
        %515 = vmatpush1.bf16.msra.mxu0 0
        %516 = vmatprep.subr.bf16.mxu0 0
        %517 = vmatpush1.bf16.msra.mxu0 0
        %518 = vmatprep.subr.bf16.mxu0 0
        %519 = vmatpush1.bf16.msra.mxu0 0
        %520 = vmatprep.subr.bf16.mxu0 0
        %521 = vmatpush1.bf16.msra.mxu0 0
        %522 = vmatprep.subr.bf16.mxu0 0
        %523 = vmatpush1.bf16.msra.mxu0 0
        %524 = vmatprep.mubr.bf16.mxu0 0
        %525 = vmatmul.mubr.bf16.gmra.mrb[0].mxu0 %v427
        %v526 = vpop.f32.mrb[0].mxu0
        %v527 = vadd.f32 0.0, %v526
        %v528 = vpop.f32.mrb[0].mxu0
        %v529 = vpop.f32.mrb[0].mxu0
        %v530 = vpop.f32.mrb[0].mxu0
        %531 = vdwg.mxu0
        %v532 = vpack.c.bf16 %v527, %v527
        %v533 = vld [vmem:[#allocation8] sm:$0xf]
        %v534 = vld [vmem:[#allocation8 + $0x4] sm:$0xf]
        %v535 = vld [vmem:[#allocation8 + $0x8] sm:$0xf]
        %v536 = vld [vmem:[#allocation8 + $0xc] sm:$0xf]
        %v537 = vld [vmem:[#allocation8 + $0x10] sm:$0xf]
        %v538 = vld [vmem:[#allocation8 + $0x14] sm:$0xf]
        %v539 = vld [vmem:[#allocation8 + $0x18] sm:$0xf]
        %v540 = vld [vmem:[#allocation8 + $0x1c] sm:$0xf]
        %v541 = vld [vmem:[#allocation8 + $0x20] sm:$0xf]
        %v542 = vld [vmem:[#allocation8 + $0x24] sm:$0xf]
        %v543 = vld [vmem:[#allocation8 + $0x28] sm:$0xf]
        %v544 = vld [vmem:[#allocation8 + $0x2c] sm:$0xf]
        %v545 = vld [vmem:[#allocation8 + $0x30] sm:$0xf]
        %v546 = vld [vmem:[#allocation8 + $0x34] sm:$0xf]
        %v547 = vld [vmem:[#allocation8 + $0x38] sm:$0xf]
        %v548 = vld [vmem:[#allocation8 + $0x3c] sm:$0xf]
        %s549 = scalar_lea.vmem %s272, 4 [#allocation2]
        %v550 = vld [vmem:[%s549] sm:$0xf]
        %551 = vmatprep.subr.bf16.mxu0 0
        %552 = vmatpush1.bf16.msra.mxu0 %v370
        %553 = vmatprep.subr.bf16.mxu0 0
        %554 = vmatpush1.bf16.msra.mxu0 %v371
        %555 = vmatprep.subr.bf16.mxu0 0
        %556 = vmatpush1.bf16.msra.mxu0 %v372
        %557 = vmatprep.subr.bf16.mxu0 0
        %558 = vmatpush1.bf16.msra.mxu0 %v373
        %559 = vmatprep.subr.bf16.mxu0 0
        %560 = vmatpush1.bf16.msra.mxu0 %v374
        %561 = vmatprep.subr.bf16.mxu0 0
        %562 = vmatpush1.bf16.msra.mxu0 %v375
        %563 = vmatprep.subr.bf16.mxu0 0
        %564 = vmatpush1.bf16.msra.mxu0 %v376
        %565 = vmatprep.subr.bf16.mxu0 0
        %566 = vmatpush1.bf16.msra.mxu0 %v377
        %567 = vmatprep.subr.bf16.mxu0 0
        %568 = vmatpush1.bf16.msra.mxu0 0
        %569 = vmatprep.subr.bf16.mxu0 0
        %570 = vmatpush1.bf16.msra.mxu0 0
        %571 = vmatprep.subr.bf16.mxu0 0
        %572 = vmatpush1.bf16.msra.mxu0 0
        %573 = vmatprep.subr.bf16.mxu0 0
        %574 = vmatpush1.bf16.msra.mxu0 0
        %575 = vmatprep.subr.bf16.mxu0 0
        %576 = vmatpush1.bf16.msra.mxu0 0
        %577 = vmatprep.subr.bf16.mxu0 0
        %578 = vmatpush1.bf16.msra.mxu0 0
        %579 = vmatprep.subr.bf16.mxu0 0
        %580 = vmatpush1.bf16.msra.mxu0 0
        %581 = vmatprep.subr.bf16.mxu0 0
        %582 = vmatpush1.bf16.msra.mxu0 0
        %583 = vmatprep.mubr.bf16.mxu0 0
        %584 = vmatmul.mubr.bf16.gmra.mrb[0].mxu0 %v550
        %v585 = vpop.f32.mrb[0].mxu0
        %v586 = vadd.f32 %v336, %v585
        %v587 = vpop.f32.mrb[0].mxu0
        %v588 = vpop.f32.mrb[0].mxu0
        %v589 = vpop.f32.mrb[0].mxu0
        %590 = vdwg.mxu0
        %v591 = vmax.f32 %v586, 0.0
        %v592 = vpack.c.bf16 %v591, %v591
        %593 = vmatprep.subr.bf16.mxu0 0
        %594 = vmatpush1.bf16.msra.mxu0 %v476
        %595 = vmatprep.subr.bf16.mxu0 0
        %596 = vmatpush1.bf16.msra.mxu0 %v477
        %597 = vmatprep.subr.bf16.mxu0 0
        %598 = vmatpush1.bf16.msra.mxu0 %v478
        %599 = vmatprep.subr.bf16.mxu0 0
        %600 = vmatpush1.bf16.msra.mxu0 %v479
        %601 = vmatprep.subr.bf16.mxu0 0
        %602 = vmatpush1.bf16.msra.mxu0 %v480
        %603 = vmatprep.subr.bf16.mxu0 0
        %604 = vmatpush1.bf16.msra.mxu0 %v481
        %605 = vmatprep.subr.bf16.mxu0 0
        %606 = vmatpush1.bf16.msra.mxu0 %v482
        %607 = vmatprep.subr.bf16.mxu0 0
        %608 = vmatpush1.bf16.msra.mxu0 %v483
        %609 = vmatprep.subr.bf16.mxu0 0
        %610 = vmatpush1.bf16.msra.mxu0 0
        %611 = vmatprep.subr.bf16.mxu0 0
        %612 = vmatpush1.bf16.msra.mxu0 0
        %613 = vmatprep.subr.bf16.mxu0 0
        %614 = vmatpush1.bf16.msra.mxu0 0
        %615 = vmatprep.subr.bf16.mxu0 0
        %616 = vmatpush1.bf16.msra.mxu0 0
        %617 = vmatprep.subr.bf16.mxu0 0
        %618 = vmatpush1.bf16.msra.mxu0 0
        %619 = vmatprep.subr.bf16.mxu0 0
        %620 = vmatpush1.bf16.msra.mxu0 0
        %621 = vmatprep.subr.bf16.mxu0 0
        %622 = vmatpush1.bf16.msra.mxu0 0
        %623 = vmatprep.subr.bf16.mxu0 0
        %624 = vmatpush1.bf16.msra.mxu0 0
        %625 = vmatprep.mubr.bf16.mxu0 0
        %626 = vmatmul.mubr.bf16.gmra.mrb[0].mxu0 %v592
        %v627 = vpop.f32.mrb[0].mxu0
        %v628 = vadd.f32 0.0, %v627
        %v629 = vpop.f32.mrb[0].mxu0
        %v630 = vpop.f32.mrb[0].mxu0
        %v631 = vpop.f32.mrb[0].mxu0
        %632 = vdwg.mxu0
        %v633 = vpack.c.bf16 %v628, %v628
        %s634 = scalar_lea.vmem [#allocation8], 64
        %v635 = vld [vmem:[%s634] sm:$0xf]
        %v636 = vld [vmem:[%s634 + $0x4] sm:$0xf]
        %v637 = vld [vmem:[%s634 + $0x8] sm:$0xf]
        %v638 = vld [vmem:[%s634 + $0xc] sm:$0xf]
        %v639 = vld [vmem:[%s634 + $0x10] sm:$0xf]
        %v640 = vld [vmem:[%s634 + $0x14] sm:$0xf]
        %v641 = vld [vmem:[%s634 + $0x18] sm:$0xf]
        %v642 = vld [vmem:[%s634 + $0x1c] sm:$0xf]
        %v643 = vld [vmem:[%s634 + $0x20] sm:$0xf]
        %v644 = vld [vmem:[%s634 + $0x24] sm:$0xf]
        %v645 = vld [vmem:[%s634 + $0x28] sm:$0xf]
        %v646 = vld [vmem:[%s634 + $0x2c] sm:$0xf]
        %v647 = vld [vmem:[%s634 + $0x30] sm:$0xf]
        %v648 = vld [vmem:[%s634 + $0x34] sm:$0xf]
        %v649 = vld [vmem:[%s634 + $0x38] sm:$0xf]
        %v650 = vld [vmem:[%s634 + $0x3c] sm:$0xf]
        %v667 = vunpack.c.l.b16 %v635
        %v668 = vunpack.c.l.b16 %v636
        %v669 = vunpack.c.l.b16 %v637
        %v670 = vunpack.c.l.b16 %v638
        %v671 = vunpack.c.l.b16 %v639
        %v672 = vunpack.c.l.b16 %v640
        %v673 = vunpack.c.l.b16 %v641
        %v674 = vunpack.c.l.b16 %v642
        %v675 = vunpack.c.l.b16 %v643
        %v676 = vunpack.c.l.b16 %v644
        %v677 = vunpack.c.l.b16 %v645
        %v678 = vunpack.c.l.b16 %v646
        %v679 = vunpack.c.l.b16 %v647
        %v680 = vunpack.c.l.b16 %v648
        %v681 = vunpack.c.l.b16 %v649
        %v682 = vunpack.c.l.b16 %v650
        %v683 = vpack.c.b16 %v668, %v667
        %v684 = vpack.c.b16 %v670, %v669
        %v685 = vpack.c.b16 %v672, %v671
        %v686 = vpack.c.b16 %v674, %v673
        %v687 = vpack.c.b16 %v676, %v675
        %v688 = vpack.c.b16 %v678, %v677
        %v689 = vpack.c.b16 %v680, %v679
        %v690 = vpack.c.b16 %v682, %v681
        %699 = vmatprep.subr.bf16.mxu0 0
        %700 = vmatpush1.bf16.msra.mxu0 %v683
        %701 = vmatprep.subr.bf16.mxu0 0
        %702 = vmatpush1.bf16.msra.mxu0 %v684
        %703 = vmatprep.subr.bf16.mxu0 0
        %704 = vmatpush1.bf16.msra.mxu0 %v685
        %705 = vmatprep.subr.bf16.mxu0 0
        %706 = vmatpush1.bf16.msra.mxu0 %v686
        %707 = vmatprep.subr.bf16.mxu0 0
        %708 = vmatpush1.bf16.msra.mxu0 %v687
        %709 = vmatprep.subr.bf16.mxu0 0
        %710 = vmatpush1.bf16.msra.mxu0 %v688
        %711 = vmatprep.subr.bf16.mxu0 0
        %712 = vmatpush1.bf16.msra.mxu0 %v689
        %713 = vmatprep.subr.bf16.mxu0 0
        %714 = vmatpush1.bf16.msra.mxu0 %v690
        %715 = vmatprep.subr.bf16.mxu0 0
        %716 = vmatpush1.bf16.msra.mxu0 0
        %717 = vmatprep.subr.bf16.mxu0 0
        %718 = vmatpush1.bf16.msra.mxu0 0
        %719 = vmatprep.subr.bf16.mxu0 0
        %720 = vmatpush1.bf16.msra.mxu0 0
        %721 = vmatprep.subr.bf16.mxu0 0
        %722 = vmatpush1.bf16.msra.mxu0 0
        %723 = vmatprep.subr.bf16.mxu0 0
        %724 = vmatpush1.bf16.msra.mxu0 0
        %725 = vmatprep.subr.bf16.mxu0 0
        %726 = vmatpush1.bf16.msra.mxu0 0
        %727 = vmatprep.subr.bf16.mxu0 0
        %728 = vmatpush1.bf16.msra.mxu0 0
        %729 = vmatprep.subr.bf16.mxu0 0
        %730 = vmatpush1.bf16.msra.mxu0 0
        %731 = vmatprep.mubr.bf16.mxu0 0
        %732 = vmatmul.mubr.bf16.gmra.mrb[0].mxu0 %v633
        %v733 = vpop.f32.mrb[0].mxu0
        %v734 = vadd.f32 0.0, %v733
        %v735 = vpop.f32.mrb[0].mxu0
        %v736 = vpop.f32.mrb[0].mxu0
        %v737 = vpop.f32.mrb[0].mxu0
        %738 = vdwg.mxu0
        %v755 = vunpack.c.l.b16 %v533
        %v756 = vunpack.c.l.b16 %v534
        %v757 = vunpack.c.l.b16 %v535
        %v758 = vunpack.c.l.b16 %v536
        %v759 = vunpack.c.l.b16 %v537
        %v760 = vunpack.c.l.b16 %v538
        %v761 = vunpack.c.l.b16 %v539
        %v762 = vunpack.c.l.b16 %v540
        %v763 = vunpack.c.l.b16 %v541
        %v764 = vunpack.c.l.b16 %v542
        %v765 = vunpack.c.l.b16 %v543
        %v766 = vunpack.c.l.b16 %v544
        %v767 = vunpack.c.l.b16 %v545
        %v768 = vunpack.c.l.b16 %v546
        %v769 = vunpack.c.l.b16 %v547
        %v770 = vunpack.c.l.b16 %v548
        %v771 = vpack.c.b16 %v756, %v755
        %v772 = vpack.c.b16 %v758, %v757
        %v773 = vpack.c.b16 %v760, %v759
        %v774 = vpack.c.b16 %v762, %v761
        %v775 = vpack.c.b16 %v764, %v763
        %v776 = vpack.c.b16 %v766, %v765
        %v777 = vpack.c.b16 %v768, %v767
        %v778 = vpack.c.b16 %v770, %v769
        %787 = vmatprep.subr.bf16.mxu0 0
        %788 = vmatpush1.bf16.msra.mxu0 %v771
        %789 = vmatprep.subr.bf16.mxu0 0
        %790 = vmatpush1.bf16.msra.mxu0 %v772
        %791 = vmatprep.subr.bf16.mxu0 0
        %792 = vmatpush1.bf16.msra.mxu0 %v773
        %793 = vmatprep.subr.bf16.mxu0 0
        %794 = vmatpush1.bf16.msra.mxu0 %v774
        %795 = vmatprep.subr.bf16.mxu0 0
        %796 = vmatpush1.bf16.msra.mxu0 %v775
        %797 = vmatprep.subr.bf16.mxu0 0
        %798 = vmatpush1.bf16.msra.mxu0 %v776
        %799 = vmatprep.subr.bf16.mxu0 0
        %800 = vmatpush1.bf16.msra.mxu0 %v777
        %801 = vmatprep.subr.bf16.mxu0 0
        %802 = vmatpush1.bf16.msra.mxu0 %v778
        %803 = vmatprep.subr.bf16.mxu0 0
        %804 = vmatpush1.bf16.msra.mxu0 0
        %805 = vmatprep.subr.bf16.mxu0 0
        %806 = vmatpush1.bf16.msra.mxu0 0
        %807 = vmatprep.subr.bf16.mxu0 0
        %808 = vmatpush1.bf16.msra.mxu0 0
        %809 = vmatprep.subr.bf16.mxu0 0
        %810 = vmatpush1.bf16.msra.mxu0 0
        %811 = vmatprep.subr.bf16.mxu0 0
        %812 = vmatpush1.bf16.msra.mxu0 0
        %813 = vmatprep.subr.bf16.mxu0 0
        %814 = vmatpush1.bf16.msra.mxu0 0
        %815 = vmatprep.subr.bf16.mxu0 0
        %816 = vmatpush1.bf16.msra.mxu0 0
        %817 = vmatprep.subr.bf16.mxu0 0
        %818 = vmatpush1.bf16.msra.mxu0 0
        %819 = vmatprep.mubr.bf16.mxu0 0
        %820 = vmatmul.mubr.bf16.gmra.mrb[0].mxu0 %v532
        %v821 = vpop.f32.mrb[0].mxu0
        %v822 = vadd.f32 %v734, %v821
        %v823 = vpop.f32.mrb[0].mxu0
        %v824 = vpop.f32.mrb[0].mxu0
        %v825 = vpop.f32.mrb[0].mxu0
        %826 = vdwg.mxu0
        %s827 = scalar_lea.vmem %s272, 8 [#allocation2]
        %v828 = vld [vmem:[%s827] sm:$0xf]
        %829 = vmatprep.subr.bf16.mxu0 0
        %830 = vmatpush1.bf16.msra.mxu0 %v370
        %831 = vmatprep.subr.bf16.mxu0 0
        %832 = vmatpush1.bf16.msra.mxu0 %v371
        %833 = vmatprep.subr.bf16.mxu0 0
        %834 = vmatpush1.bf16.msra.mxu0 %v372
        %835 = vmatprep.subr.bf16.mxu0 0
        %836 = vmatpush1.bf16.msra.mxu0 %v373
        %837 = vmatprep.subr.bf16.mxu0 0
        %838 = vmatpush1.bf16.msra.mxu0 %v374
        %839 = vmatprep.subr.bf16.mxu0 0
        %840 = vmatpush1.bf16.msra.mxu0 %v375
        %841 = vmatprep.subr.bf16.mxu0 0
        %842 = vmatpush1.bf16.msra.mxu0 %v376
        %843 = vmatprep.subr.bf16.mxu0 0
        %844 = vmatpush1.bf16.msra.mxu0 %v377
        %845 = vmatprep.subr.bf16.mxu0 0
        %846 = vmatpush1.bf16.msra.mxu0 0
        %847 = vmatprep.subr.bf16.mxu0 0
        %848 = vmatpush1.bf16.msra.mxu0 0
        %849 = vmatprep.subr.bf16.mxu0 0
        %850 = vmatpush1.bf16.msra.mxu0 0
        %851 = vmatprep.subr.bf16.mxu0 0
        %852 = vmatpush1.bf16.msra.mxu0 0
        %853 = vmatprep.subr.bf16.mxu0 0
        %854 = vmatpush1.bf16.msra.mxu0 0
        %855 = vmatprep.subr.bf16.mxu0 0
        %856 = vmatpush1.bf16.msra.mxu0 0
        %857 = vmatprep.subr.bf16.mxu0 0
        %858 = vmatpush1.bf16.msra.mxu0 0
        %859 = vmatprep.subr.bf16.mxu0 0
        %860 = vmatpush1.bf16.msra.mxu0 0
        %861 = vmatprep.mubr.bf16.mxu0 0
        %862 = vmatmul.mubr.bf16.gmra.mrb[0].mxu0 %v828
        %v863 = vpop.f32.mrb[0].mxu0
        %v864 = vadd.f32 %v336, %v863
        %v865 = vpop.f32.mrb[0].mxu0
        %v866 = vpop.f32.mrb[0].mxu0
        %v867 = vpop.f32.mrb[0].mxu0
        %868 = vdwg.mxu0
        %v869 = vmax.f32 %v864, 0.0
        %v870 = vpack.c.bf16 %v869, %v869
        %871 = vmatprep.subr.bf16.mxu0 0
        %872 = vmatpush1.bf16.msra.mxu0 %v476
        %873 = vmatprep.subr.bf16.mxu0 0
        %874 = vmatpush1.bf16.msra.mxu0 %v477
        %875 = vmatprep.subr.bf16.mxu0 0
        %876 = vmatpush1.bf16.msra.mxu0 %v478
        %877 = vmatprep.subr.bf16.mxu0 0
        %878 = vmatpush1.bf16.msra.mxu0 %v479
        %879 = vmatprep.subr.bf16.mxu0 0
        %880 = vmatpush1.bf16.msra.mxu0 %v480
        %881 = vmatprep.subr.bf16.mxu0 0
        %882 = vmatpush1.bf16.msra.mxu0 %v481
        %883 = vmatprep.subr.bf16.mxu0 0
        %884 = vmatpush1.bf16.msra.mxu0 %v482
        %885 = vmatprep.subr.bf16.mxu0 0
        %886 = vmatpush1.bf16.msra.mxu0 %v483
        %887 = vmatprep.subr.bf16.mxu0 0
        %888 = vmatpush1.bf16.msra.mxu0 0
        %889 = vmatprep.subr.bf16.mxu0 0
        %890 = vmatpush1.bf16.msra.mxu0 0
        %891 = vmatprep.subr.bf16.mxu0 0
        %892 = vmatpush1.bf16.msra.mxu0 0
        %893 = vmatprep.subr.bf16.mxu0 0
        %894 = vmatpush1.bf16.msra.mxu0 0
        %895 = vmatprep.subr.bf16.mxu0 0
        %896 = vmatpush1.bf16.msra.mxu0 0
        %897 = vmatprep.subr.bf16.mxu0 0
        %898 = vmatpush1.bf16.msra.mxu0 0
        %899 = vmatprep.subr.bf16.mxu0 0
        %900 = vmatpush1.bf16.msra.mxu0 0
        %901 = vmatprep.subr.bf16.mxu0 0
        %902 = vmatpush1.bf16.msra.mxu0 0
        %903 = vmatprep.mubr.bf16.mxu0 0
        %904 = vmatmul.mubr.bf16.gmra.mrb[0].mxu0 %v870
        %v905 = vpop.f32.mrb[0].mxu0
        %v906 = vadd.f32 0.0, %v905
        %v907 = vpop.f32.mrb[0].mxu0
        %v908 = vpop.f32.mrb[0].mxu0
        %v909 = vpop.f32.mrb[0].mxu0
        %910 = vdwg.mxu0
        %v911 = vpack.c.bf16 %v906, %v906
        %s912 = scalar_lea.vmem [#allocation8], 128
        %v913 = vld [vmem:[%s912] sm:$0xf]
        %v914 = vld [vmem:[%s912 + $0x4] sm:$0xf]
        %v915 = vld [vmem:[%s912 + $0x8] sm:$0xf]
        %v916 = vld [vmem:[%s912 + $0xc] sm:$0xf]
        %v917 = vld [vmem:[%s912 + $0x10] sm:$0xf]
        %v918 = vld [vmem:[%s912 + $0x14] sm:$0xf]
        %v919 = vld [vmem:[%s912 + $0x18] sm:$0xf]
        %v920 = vld [vmem:[%s912 + $0x1c] sm:$0xf]
        %v921 = vld [vmem:[%s912 + $0x20] sm:$0xf]
        %v922 = vld [vmem:[%s912 + $0x24] sm:$0xf]
        %v923 = vld [vmem:[%s912 + $0x28] sm:$0xf]
        %v924 = vld [vmem:[%s912 + $0x2c] sm:$0xf]
        %v925 = vld [vmem:[%s912 + $0x30] sm:$0xf]
        %v926 = vld [vmem:[%s912 + $0x34] sm:$0xf]
        %v927 = vld [vmem:[%s912 + $0x38] sm:$0xf]
        %v928 = vld [vmem:[%s912 + $0x3c] sm:$0xf]
        %v945 = vunpack.c.l.b16 %v913
        %v946 = vunpack.c.l.b16 %v914
        %v947 = vunpack.c.l.b16 %v915
        %v948 = vunpack.c.l.b16 %v916
        %v949 = vunpack.c.l.b16 %v917
        %v950 = vunpack.c.l.b16 %v918
        %v951 = vunpack.c.l.b16 %v919
        %v952 = vunpack.c.l.b16 %v920
        %v953 = vunpack.c.l.b16 %v921
        %v954 = vunpack.c.l.b16 %v922
        %v955 = vunpack.c.l.b16 %v923
        %v956 = vunpack.c.l.b16 %v924
        %v957 = vunpack.c.l.b16 %v925
        %v958 = vunpack.c.l.b16 %v926
        %v959 = vunpack.c.l.b16 %v927
        %v960 = vunpack.c.l.b16 %v928
        %v961 = vpack.c.b16 %v946, %v945
        %v962 = vpack.c.b16 %v948, %v947
        %v963 = vpack.c.b16 %v950, %v949
        %v964 = vpack.c.b16 %v952, %v951
        %v965 = vpack.c.b16 %v954, %v953
        %v966 = vpack.c.b16 %v956, %v955
        %v967 = vpack.c.b16 %v958, %v957
        %v968 = vpack.c.b16 %v960, %v959
        %977 = vmatprep.subr.bf16.mxu0 0
        %978 = vmatpush1.bf16.msra.mxu0 %v961
        %979 = vmatprep.subr.bf16.mxu0 0
        %980 = vmatpush1.bf16.msra.mxu0 %v962
        %981 = vmatprep.subr.bf16.mxu0 0
        %982 = vmatpush1.bf16.msra.mxu0 %v963
        %983 = vmatprep.subr.bf16.mxu0 0
        %984 = vmatpush1.bf16.msra.mxu0 %v964
        %985 = vmatprep.subr.bf16.mxu0 0
        %986 = vmatpush1.bf16.msra.mxu0 %v965
        %987 = vmatprep.subr.bf16.mxu0 0
        %988 = vmatpush1.bf16.msra.mxu0 %v966
        %989 = vmatprep.subr.bf16.mxu0 0
        %990 = vmatpush1.bf16.msra.mxu0 %v967
        %991 = vmatprep.subr.bf16.mxu0 0
        %992 = vmatpush1.bf16.msra.mxu0 %v968
        %993 = vmatprep.subr.bf16.mxu0 0
        %994 = vmatpush1.bf16.msra.mxu0 0
        %995 = vmatprep.subr.bf16.mxu0 0
        %996 = vmatpush1.bf16.msra.mxu0 0
        %997 = vmatprep.subr.bf16.mxu0 0
        %998 = vmatpush1.bf16.msra.mxu0 0
        %999 = vmatprep.subr.bf16.mxu0 0
        %1000 = vmatpush1.bf16.msra.mxu0 0
        %1001 = vmatprep.subr.bf16.mxu0 0
        %1002 = vmatpush1.bf16.msra.mxu0 0
        %1003 = vmatprep.subr.bf16.mxu0 0
        %1004 = vmatpush1.bf16.msra.mxu0 0
        %1005 = vmatprep.subr.bf16.mxu0 0
        %1006 = vmatpush1.bf16.msra.mxu0 0
        %1007 = vmatprep.subr.bf16.mxu0 0
        %1008 = vmatpush1.bf16.msra.mxu0 0
        %1009 = vmatprep.mubr.bf16.mxu0 0
        %1010 = vmatmul.mubr.bf16.gmra.mrb[0].mxu0 %v911
        %v1011 = vpop.f32.mrb[0].mxu0
        %v1012 = vadd.f32 0.0, %v1011
        %v1013 = vpop.f32.mrb[0].mxu0
        %v1014 = vpop.f32.mrb[0].mxu0
        %v1015 = vpop.f32.mrb[0].mxu0
        %1016 = vdwg.mxu0
        %v1017 = vadd.f32 %v822, %v1012
        %s1018 = scalar_lea.vmem %s272, 12 [#allocation2]
        %v1019 = vld [vmem:[%s1018] sm:$0xf]
        %1020 = vmatprep.subr.bf16.mxu0 0
        %1021 = vmatpush1.bf16.msra.mxu0 %v370
        %1022 = vmatprep.subr.bf16.mxu0 0
        %1023 = vmatpush1.bf16.msra.mxu0 %v371
        %1024 = vmatprep.subr.bf16.mxu0 0
        %1025 = vmatpush1.bf16.msra.mxu0 %v372
        %1026 = vmatprep.subr.bf16.mxu0 0
        %1027 = vmatpush1.bf16.msra.mxu0 %v373
        %1028 = vmatprep.subr.bf16.mxu0 0
        %1029 = vmatpush1.bf16.msra.mxu0 %v374
        %1030 = vmatprep.subr.bf16.mxu0 0
        %1031 = vmatpush1.bf16.msra.mxu0 %v375
        %1032 = vmatprep.subr.bf16.mxu0 0
        %1033 = vmatpush1.bf16.msra.mxu0 %v376
        %1034 = vmatprep.subr.bf16.mxu0 0
        %1035 = vmatpush1.bf16.msra.mxu0 %v377
        %1036 = vmatprep.subr.bf16.mxu0 0
        %1037 = vmatpush1.bf16.msra.mxu0 0
        %1038 = vmatprep.subr.bf16.mxu0 0
        %1039 = vmatpush1.bf16.msra.mxu0 0
        %1040 = vmatprep.subr.bf16.mxu0 0
        %1041 = vmatpush1.bf16.msra.mxu0 0
        %1042 = vmatprep.subr.bf16.mxu0 0
        %1043 = vmatpush1.bf16.msra.mxu0 0
        %1044 = vmatprep.subr.bf16.mxu0 0
        %1045 = vmatpush1.bf16.msra.mxu0 0
        %1046 = vmatprep.subr.bf16.mxu0 0
        %1047 = vmatpush1.bf16.msra.mxu0 0
        %1048 = vmatprep.subr.bf16.mxu0 0
        %1049 = vmatpush1.bf16.msra.mxu0 0
        %1050 = vmatprep.subr.bf16.mxu0 0
        %1051 = vmatpush1.bf16.msra.mxu0 0
        %1052 = vmatprep.mubr.bf16.mxu0 0
        %1053 = vmatmul.mubr.bf16.gmra.mrb[0].mxu0 %v1019
        %v1054 = vpop.f32.mrb[0].mxu0
        %v1055 = vadd.f32 %v336, %v1054
        %v1056 = vpop.f32.mrb[0].mxu0
        %v1057 = vpop.f32.mrb[0].mxu0
        %v1058 = vpop.f32.mrb[0].mxu0
        %1059 = vdwg.mxu0
        %v1060 = vmax.f32 %v1055, 0.0
        %v1061 = vpack.c.bf16 %v1060, %v1060
        %1062 = vmatprep.subr.bf16.mxu0 0
        %1063 = vmatpush1.bf16.msra.mxu0 %v476
        %1064 = vmatprep.subr.bf16.mxu0 0
        %1065 = vmatpush1.bf16.msra.mxu0 %v477
        %1066 = vmatprep.subr.bf16.mxu0 0
        %1067 = vmatpush1.bf16.msra.mxu0 %v478
        %1068 = vmatprep.subr.bf16.mxu0 0
        %1069 = vmatpush1.bf16.msra.mxu0 %v479
        %1070 = vmatprep.subr.bf16.mxu0 0
        %1071 = vmatpush1.bf16.msra.mxu0 %v480
        %1072 = vmatprep.subr.bf16.mxu0 0
        %1073 = vmatpush1.bf16.msra.mxu0 %v481
        %1074 = vmatprep.subr.bf16.mxu0 0
        %1075 = vmatpush1.bf16.msra.mxu0 %v482
        %1076 = vmatprep.subr.bf16.mxu0 0
        %1077 = vmatpush1.bf16.msra.mxu0 %v483
        %1078 = vmatprep.subr.bf16.mxu0 0
        %1079 = vmatpush1.bf16.msra.mxu0 0
        %1080 = vmatprep.subr.bf16.mxu0 0
        %1081 = vmatpush1.bf16.msra.mxu0 0
        %1082 = vmatprep.subr.bf16.mxu0 0
        %1083 = vmatpush1.bf16.msra.mxu0 0
        %1084 = vmatprep.subr.bf16.mxu0 0
        %1085 = vmatpush1.bf16.msra.mxu0 0
        %1086 = vmatprep.subr.bf16.mxu0 0
        %1087 = vmatpush1.bf16.msra.mxu0 0
        %1088 = vmatprep.subr.bf16.mxu0 0
        %1089 = vmatpush1.bf16.msra.mxu0 0
        %1090 = vmatprep.subr.bf16.mxu0 0
        %1091 = vmatpush1.bf16.msra.mxu0 0
        %1092 = vmatprep.subr.bf16.mxu0 0
        %1093 = vmatpush1.bf16.msra.mxu0 0
        %1094 = vmatprep.mubr.bf16.mxu0 0
        %1095 = vmatmul.mubr.bf16.gmra.mrb[0].mxu0 %v1061
        %v1096 = vpop.f32.mrb[0].mxu0
        %v1097 = vadd.f32 0.0, %v1096
        %v1098 = vpop.f32.mrb[0].mxu0
        %v1099 = vpop.f32.mrb[0].mxu0
        %v1100 = vpop.f32.mrb[0].mxu0
        %1101 = vdwg.mxu0
        %v1102 = vpack.c.bf16 %v1097, %v1097
        %s1103 = scalar_lea.vmem [#allocation8], 192
        %v1104 = vld [vmem:[%s1103] sm:$0xf]
        %v1105 = vld [vmem:[%s1103 + $0x4] sm:$0xf]
        %v1106 = vld [vmem:[%s1103 + $0x8] sm:$0xf]
        %v1107 = vld [vmem:[%s1103 + $0xc] sm:$0xf]
        %v1108 = vld [vmem:[%s1103 + $0x10] sm:$0xf]
        %v1109 = vld [vmem:[%s1103 + $0x14] sm:$0xf]
        %v1110 = vld [vmem:[%s1103 + $0x18] sm:$0xf]
        %v1111 = vld [vmem:[%s1103 + $0x1c] sm:$0xf]
        %v1112 = vld [vmem:[%s1103 + $0x20] sm:$0xf]
        %v1113 = vld [vmem:[%s1103 + $0x24] sm:$0xf]
        %v1114 = vld [vmem:[%s1103 + $0x28] sm:$0xf]
        %v1115 = vld [vmem:[%s1103 + $0x2c] sm:$0xf]
        %v1116 = vld [vmem:[%s1103 + $0x30] sm:$0xf]
        %v1117 = vld [vmem:[%s1103 + $0x34] sm:$0xf]
        %v1118 = vld [vmem:[%s1103 + $0x38] sm:$0xf]
        %v1119 = vld [vmem:[%s1103 + $0x3c] sm:$0xf]
        %v1136 = vunpack.c.l.b16 %v1104
        %v1137 = vunpack.c.l.b16 %v1105
        %v1138 = vunpack.c.l.b16 %v1106
        %v1139 = vunpack.c.l.b16 %v1107
        %v1140 = vunpack.c.l.b16 %v1108
        %v1141 = vunpack.c.l.b16 %v1109
        %v1142 = vunpack.c.l.b16 %v1110
        %v1143 = vunpack.c.l.b16 %v1111
        %v1144 = vunpack.c.l.b16 %v1112
        %v1145 = vunpack.c.l.b16 %v1113
        %v1146 = vunpack.c.l.b16 %v1114
        %v1147 = vunpack.c.l.b16 %v1115
        %v1148 = vunpack.c.l.b16 %v1116
        %v1149 = vunpack.c.l.b16 %v1117
        %v1150 = vunpack.c.l.b16 %v1118
        %v1151 = vunpack.c.l.b16 %v1119
        %v1152 = vpack.c.b16 %v1137, %v1136
        %v1153 = vpack.c.b16 %v1139, %v1138
        %v1154 = vpack.c.b16 %v1141, %v1140
        %v1155 = vpack.c.b16 %v1143, %v1142
        %v1156 = vpack.c.b16 %v1145, %v1144
        %v1157 = vpack.c.b16 %v1147, %v1146
        %v1158 = vpack.c.b16 %v1149, %v1148
        %v1159 = vpack.c.b16 %v1151, %v1150
        %1168 = vmatprep.subr.bf16.mxu0 0
        %1169 = vmatpush1.bf16.msra.mxu0 %v1152
        %1170 = vmatprep.subr.bf16.mxu0 0
        %1171 = vmatpush1.bf16.msra.mxu0 %v1153
        %1172 = vmatprep.subr.bf16.mxu0 0
        %1173 = vmatpush1.bf16.msra.mxu0 %v1154
        %1174 = vmatprep.subr.bf16.mxu0 0
        %1175 = vmatpush1.bf16.msra.mxu0 %v1155
        %1176 = vmatprep.subr.bf16.mxu0 0
        %1177 = vmatpush1.bf16.msra.mxu0 %v1156
        %1178 = vmatprep.subr.bf16.mxu0 0
        %1179 = vmatpush1.bf16.msra.mxu0 %v1157
        %1180 = vmatprep.subr.bf16.mxu0 0
        %1181 = vmatpush1.bf16.msra.mxu0 %v1158
        %1182 = vmatprep.subr.bf16.mxu0 0
        %1183 = vmatpush1.bf16.msra.mxu0 %v1159
        %1184 = vmatprep.subr.bf16.mxu0 0
        %1185 = vmatpush1.bf16.msra.mxu0 0
        %1186 = vmatprep.subr.bf16.mxu0 0
        %1187 = vmatpush1.bf16.msra.mxu0 0
        %1188 = vmatprep.subr.bf16.mxu0 0
        %1189 = vmatpush1.bf16.msra.mxu0 0
        %1190 = vmatprep.subr.bf16.mxu0 0
        %1191 = vmatpush1.bf16.msra.mxu0 0
        %1192 = vmatprep.subr.bf16.mxu0 0
        %1193 = vmatpush1.bf16.msra.mxu0 0
        %1194 = vmatprep.subr.bf16.mxu0 0
        %1195 = vmatpush1.bf16.msra.mxu0 0
        %1196 = vmatprep.subr.bf16.mxu0 0
        %1197 = vmatpush1.bf16.msra.mxu0 0
        %1198 = vmatprep.subr.bf16.mxu0 0
        %1199 = vmatpush1.bf16.msra.mxu0 0
        %1200 = vmatprep.mubr.bf16.mxu0 0
        %1201 = vmatmul.mubr.bf16.gmra.mrb[0].mxu0 %v1102
        %v1202 = vpop.f32.mrb[0].mxu0
        %v1203 = vadd.f32 0.0, %v1202
        %v1204 = vpop.f32.mrb[0].mxu0
        %v1205 = vpop.f32.mrb[0].mxu0
        %v1206 = vpop.f32.mrb[0].mxu0
        %1207 = vdwg.mxu0
        %v1208 = vadd.f32 %v1017, %v1203
        %v1209 = vld [vmem:[%s5] sm:$0x1]
        %v1211 = vlaneseq
        %v1212 = vshrl.u32 %v1211, 7
        %v1213 = vsub.s32 0, %v1212
        %v1214 = vrot.slane %v1209, %v1213
        %v1216 = vadd.f32 %v1208, %v1214
        %v1217 = vmul.f32 %v1216, %v1216
        %1218 = vadd.xlane.f32.xlu0 %v1217
        %v1219 = vpop.xlane.xlu0 %1218
        %v1220 = vmax.f32 %v1219, 1e-24
        %v1221 = vrsqrt.pop %v1220
        %v1222 = vmul.f32 %v1216, %v1221
        %1223 = vst [vmem:[%s312] sm:$0xff] %v1222
        %s1224 = sand.u32 %s164, 1
        %s1225 = scalar_lea.sflag [#allocation4], %s1224
        %s1226 = sand.u32 %s164, 1
        %s1227 = smul.addr %s1226, 8
        %s1228 = scalar_lea.vmem [#allocation10], %s1227
        // Predicated region
        $region61: #{tpu_custom_call.1} parent=43 // pred_check
          %p1229 = pneg %p174
        $region62: #{tpu_custom_call.1} parent=43 // pred_check_branch
          %1231 = sbr.rel (%p1229) target = $region64
        $region63: #{tpu_custom_call.1} parent=43 // pred_region
          %s1233 = ssub.s32 128, 128
          %1234 = vsyncadd %s1225, %s1233
          %s1235 = smul.addr %s25, 128
          %s1236 = scalar_lea.hbm %s6, %s1235
          %s1238 = sshll.u32 %s1228, 4
          %s1239 = int_to_ptr.vmem [resolvable:$true] %s1238
          %1241 = dma.vmem_to_hbm [thread:$0]  %s1239, 128, %s1236, %s1225
        $region64: #{tpu_custom_call.1} parent=43 // pred_fallthru
          _
      $region44: #{tpu_custom_call.1} parent=5 // pred_fallthru
        _
      %p1242 = scmp.le.s32.totalorder 2, %s20
      // Predicated region
      $region65: #{tpu_custom_call.1} parent=5 // pred_check
        %p1243 = pneg %p1242
      $region66: #{tpu_custom_call.1} parent=5 // pred_check_branch
        %1245 = sbr.rel (%p1243) target = $region68
      $region67: #{tpu_custom_call.1} parent=5 // pred_region
        %s1246 = ssub.s32 %s20, 2
        // Predicated region
        $region69: #{tpu_custom_call.1} parent=67 // pred_check
          %p1247 = pneg %p180
        $region70: #{tpu_custom_call.1} parent=67 // pred_check_branch
          %1249 = sbr.rel (%p1247) target = $region72
        $region71: #{tpu_custom_call.1} parent=67 // pred_region
          %s1250 = sand.u32 %s165, 1
          %s1251 = scalar_lea.sflag [#allocation4], %s1250
          %s1252 = sand.u32 %s165, 1
          %s1253 = smul.addr %s1252, 8
          %s1254 = scalar_lea.vmem [#allocation10], %s1253
          %1255 = dma.done %s1251, 128
        $region72: #{tpu_custom_call.1} parent=67 // pred_fallthru
          _
      $region68: #{tpu_custom_call.1} parent=5 // pred_fallthru
        _
    $region6: #{tpu_custom_call.1} parent=1 // loop_footer
      %s24 = sadd.s32 1, %s20
    $region7: #{tpu_custom_call.1} parent=1 // loop_footer_branch
      %19 = sbr.rel target = $region3
    $region8: #{tpu_custom_call.1} parent=1 // loop_exit
      _
    %1256 = vsyncpa [#allocation3], 1
    %s1257 = scalar_lea.sflag [#allocation3], 1
    %1258 = vsyncpa %s1257, 1
    %1259 = vsyncpa [#allocation6], 1
    %1260 = vsyncpa [#allocation9], 1
    %1261 = vsyncpa [#allocation4], 1
    %s1262 = scalar_lea.sflag [#allocation4], 1
    %1263 = vsyncpa %s1262, 1

</llo_original>
